<compile_context>
chip_gen: v6e
topology: v6e:2x2x1
jax: 0.10.0
libtpu: 0.0.40
codegen_flags: <defaults>
</compile_context>

<pallas_src>
import jax
import jax.numpy as jnp
from jax.experimental import pallas as pl
from jax.experimental.pallas import tpu as pltpu


# ------------------------------ Pallas kernel -------------------------------


def tcrpn_kernel(x1_ref, x2_ref,
                 ca_w1t_ref, ca_b1_ref, ca_w2_ref, ca_b2_ref,
                 sa_mat_ref, sa_b_ref,
                 tf_w1_ref, tf_w2_ref, tf_b_ref,
                 tsf_w1_ref, tsf_w2_ref, tsf_b_ref,
                 o_ref):
    """Whole TCRPN_WOSF forward for one batch element, layout (C, H*W)."""
    x1 = x1_ref[0]                                    # (C, HW)
    x2 = x2_ref[0]                                    # (C, HW)
    HW = x1.shape[1]

    # identity = ReLU(BN(conv1x1(cat(x1, x2)))) ; BN folded into weights/bias,
    # the concat is expressed as two (2C, C) @ (C, HW) matmuls.
    identity = jnp.maximum(
        jnp.dot(tf_w1_ref[...], x1, preferred_element_type=jnp.float32)
        + jnp.dot(tf_w2_ref[...], x2, preferred_element_type=jnp.float32)
        + tf_b_ref[...], 0.0)                         # (2C, HW)

    def cbam(x, i):
        # ---- channel attention (VPU only: broadcast-mul + tiny reductions) --
        avg = jnp.mean(x, axis=1, keepdims=True)      # (C, 1)
        mx = jnp.max(x, axis=1, keepdims=True)        # (C, 1)
        w1t = ca_w1t_ref[i]                           # (C, mid)  == fc1.W^T
        b1 = ca_b1_ref[i]                             # (1, mid)
        w2 = ca_w2_ref[i]                             # (C, mid)  == fc2.W
        b2 = ca_b2_ref[i]                             # (C, 1)

        def mlp(v):                                   # v: (C, 1)
            h = jnp.sum(w1t * v, axis=0, keepdims=True) + b1      # (1, mid)
            h = jnp.maximum(h, 0.0)
            return jnp.sum(w2 * h, axis=1, keepdims=True) + b2    # (C, 1)

        ca = jax.nn.sigmoid(mlp(avg) + mlp(mx))       # (C, 1)
        xca = x * ca                                  # (C, HW)

        # ---- spatial attention: 7x7 SAME conv as a Toeplitz/im2col matmul ---
        s_avg = jnp.mean(xca, axis=0, keepdims=True)  # (1, HW)
        s_max = jnp.max(xca, axis=0, keepdims=True)   # (1, HW)
        conv = (jnp.dot(s_avg, sa_mat_ref[i, :HW, :],
                        preferred_element_type=jnp.float32)
                + jnp.dot(s_max, sa_mat_ref[i, HW:, :],
                          preferred_element_type=jnp.float32)
                + sa_b_ref[i])                        # (1, HW)
        return xca * jax.nn.sigmoid(conv)             # (C, HW)

    y1 = cbam(x1, 0)
    y2 = cbam(x2, 1)

    # TSF = ReLU(BN(conv1x1(cat(y1, y2))))  (folded BN, split weights)
    tsf = jnp.maximum(
        jnp.dot(tsf_w1_ref[...], y1, preferred_element_type=jnp.float32)
        + jnp.dot(tsf_w2_ref[...], y2, preferred_element_type=jnp.float32)
        + tsf_b_ref[...], 0.0)                        # (2C, HW)

    # out = relu(identity * TSF + identity)   (inplace ReLU in the reference)
    o_ref[0] = jnp.maximum(identity * tsf + identity, 0.0)


# --------------------------------- wrapper -----------------------------------


def tcrpn_wosf_forward(x1_nchw, x2_nchw, params):
    N, C, H, W = x1_nchw.shape
    HW = H * W
    C2 = 2 * C
    # NCHW kept: only free reshapes, outputs stay lane-dense (last dim = HW).
    x1 = x1_nchw.reshape(N, C, HW).astype(jnp.float32)
    x2 = x2_nchw.reshape(N, C, HW).astype(jnp.float32)
    p = params
    mid = p["ca_w1t"].shape[-1]

    def full2(shape):
        return pl.BlockSpec(shape, lambda n: (0, 0))

    def full3(shape):
        return pl.BlockSpec(shape, lambda n: (0, 0, 0))

    out = pl.pallas_call(
        tcrpn_kernel,
        out_shape=jax.ShapeDtypeStruct((N, C2, HW), jnp.float32),
        grid=(N,),
        in_specs=[
            pl.BlockSpec((1, C, HW), lambda n: (n, 0, 0)),   # x1
            pl.BlockSpec((1, C, HW), lambda n: (n, 0, 0)),   # x2
            full3((2, C, mid)),                              # ca_w1t
            full3((2, 1, mid)),                              # ca_b1
            full3((2, C, mid)),                              # ca_w2
            full3((2, C, 1)),                                # ca_b2
            full3((2, 2 * HW, HW)),                          # sa_mat (Toeplitz)
            full3((2, 1, 1)),                                # sa_b
            full2((C2, C)),                                  # tf_w1 (BN folded)
            full2((C2, C)),                                  # tf_w2
            full2((C2, 1)),                                  # tf_b
            full2((C2, C)),                                  # tsf_w1
            full2((C2, C)),                                  # tsf_w2
            full2((C2, 1)),                                  # tsf_b
        ],
        out_specs=pl.BlockSpec((1, C2, HW), lambda n: (n, 0, 0)),
        compiler_params=pltpu.CompilerParams(
            dimension_semantics=("parallel",)),              # v7x: 1 image / TC
    )(x1, x2,
      p["ca_w1t"], p["ca_b1"], p["ca_w2"], p["ca_b2"],
      p["sa_mat"], p["sa_b"],
      p["tf_w1"], p["tf_w2"], p["tf_b"],
      p["tsf_w1"], p["tsf_w2"], p["tsf_b"])
    return out.reshape(N, C2, H, W)


# ----------------------- deterministic parameter init -----------------------


def build_spatial_conv_matrix(w, H, W):
    """(2,7,7) SAME-conv (pad=3) weights -> (2*H*W, H*W) Toeplitz matrix.

    out_flat = concat([avg_flat, max_flat]) @ M  reproduces the 7x7 conv.
    """
    HW = H * W
    ho = jnp.arange(H)
    wo = jnp.arange(W)
    hi = jnp.arange(H)
    wi = jnp.arange(W)
    ki = hi[:, None] - ho[None, :] + 3              # (H_in, H_out)
    kj = wi[:, None] - wo[None, :] + 3              # (W_in, W_out)
    vi = (ki >= 0) & (ki < 7)
    vj = (kj >= 0) & (kj < 7)
    kic = jnp.clip(ki, 0, 6)
    kjc = jnp.clip(kj, 0, 6)
    m = w[:, kic[:, None, :, None], kjc[None, :, None, :]]   # (2,Hi,Wi,Ho,Wo)
    mask = (vi[:, None, :, None] & vj[None, :, None, :]).astype(w.dtype)
    return (m * mask[None]).reshape(2 * HW, HW)


def init_params(key, C, H, W, reduction_ratio=8):
    mid = max(C // reduction_ratio, 1)
    C2 = 2 * C
    eps = 1e-5

    def nrm(k, shape, s=0.2):
        return jax.random.normal(k, shape, jnp.float32) * s

    def cbam_raw(k):
        kk = jax.random.split(k, 6)
        return dict(
            w1=nrm(kk[0], (mid, C)), b1=nrm(kk[1], (mid,)),
            w2=nrm(kk[2], (C, mid)), b2=nrm(kk[3], (C,)),
            sa_w=nrm(kk[4], (2, 7, 7)), sa_b=nrm(kk[5], ()),
        )

    def bnconv_raw(k):
        kk = jax.random.split(k, 5)
        w = nrm(kk[0], (C2, C2))                       # PyTorch (out, in)
        gamma = 1.0 + nrm(kk[1], (C2,), 0.1)
        beta = nrm(kk[2], (C2,), 0.1)
        mean = nrm(kk[3], (C2,), 0.1)
        var = jnp.abs(nrm(kk[4], (C2,), 0.1)) + 1.0
        scale = gamma / jnp.sqrt(var + eps)            # BN (inference form)
        bias = beta - mean * scale
        return dict(w=w, scale=scale, bias=bias)

    ks = jax.random.split(key, 4)
    raw = dict(ssae1=cbam_raw(ks[0]), ssae2=cbam_raw(ks[1]),
               tf=bnconv_raw(ks[2]), tsf=bnconv_raw(ks[3]))

    def stack2(f):
        return jnp.stack([f(raw["ssae1"]), f(raw["ssae2"])], axis=0)

    p = dict(
        ca_w1t=stack2(lambda r: r["w1"].T),                       # (2, C, mid)
        ca_b1=stack2(lambda r: r["b1"].reshape(1, mid)),          # (2, 1, mid)
        ca_w2=stack2(lambda r: r["w2"]),                          # (2, C, mid)
        ca_b2=stack2(lambda r: r["b2"].reshape(C, 1)),            # (2, C, 1)
        sa_mat=stack2(lambda r: build_spatial_conv_matrix(r["sa_w"], H, W)),
        sa_b=stack2(lambda r: r["sa_b"].reshape(1, 1)),           # (2, 1, 1)
    )
    for name in ("tf", "tsf"):
        r = raw[name]
        wf = r["w"] * r["scale"][:, None]      # fold BN scale into conv weight
        p[name + "_w1"] = wf[:, :C]
        p[name + "_w2"] = wf[:, C:]
        p[name + "_b"] = r["bias"].reshape(C2, 1)
    p["raw"] = raw
    return p


# -------------------------- pure-JAX reference check -------------------------


def ref_forward(x1, x2, raw):
    def cbam(x, p):
        avg = jnp.mean(x, axis=(2, 3))
        mx = jnp.max(x, axis=(2, 3))

        def mlp(v):
            h = jax.nn.relu(v @ p["w1"].T + p["b1"])
            return h @ p["w2"].T + p["b2"]

        ca = jax.nn.sigmoid(mlp(avg) + mlp(mx))
        xca = x * ca[:, :, None, None]
        s = jnp.stack([jnp.mean(xca, axis=1), jnp.max(xca, axis=1)], axis=1)
        conv = jax.lax.conv_general_dilated(
            s, p["sa_w"][None], (1, 1), "SAME",
            dimension_numbers=("NCHW", "OIHW", "NCHW")) + p["sa_b"]
        return xca * jax.nn.sigmoid(conv)

    def tfb(x, p):
        y = jnp.einsum("oi,nihw->nohw", p["w"], x)
        y = y * p["scale"][None, :, None, None] + p["bias"][None, :, None, None]
        return jax.nn.relu(y)

    identity = tfb(jnp.concatenate([x1, x2], axis=1), raw["tf"])
    tsf = tfb(jnp.concatenate([cbam(x1, raw["ssae1"]),
                               cbam(x2, raw["ssae2"])], axis=1), raw["tsf"])
    return jax.nn.relu(identity * tsf + identity)


# ----------------------------------- main ------------------------------------


if __name__ == "__main__":
    N, C, H, W = 2, 16, 16, 16  # inplane = 16 (reduction_ratio=8 -> mid=2)

    key = jax.random.PRNGKey(0)
    k1, k2 = jax.random.split(key)
    x1 = jax.random.normal(k1, (N, C, H, W), jnp.float32)
    x2 = jax.random.normal(k2, (N, C, H, W), jnp.float32)

    params = init_params(jax.random.PRNGKey(42), C, H, W)

    out = jax.block_until_ready(tcrpn_wosf_forward(x1, x2, params))
    ref = jax.block_until_ready(ref_forward(x1, x2, params["raw"]))

    assert out.shape == (N, 2 * C, H, W), out.shape
    max_err = float(jnp.max(jnp.abs(out - ref)))
    assert jnp.allclose(out, ref, rtol=5e-3, atol=5e-3), max_err

    print("KERNEL_OK")
</pallas_src>

<mosaic_0001>
module attributes {stable_mosaic.version = 11 : i64} {
  func.func @tcrpn_kernel(%arg0: i32, %arg1: memref<1x16x256xf32, #tpu.memory_space<vmem>>, %arg2: memref<1x16x256xf32, #tpu.memory_space<vmem>>, %arg3: memref<2x16x2xf32, #tpu.memory_space<vmem>>, %arg4: memref<2x1x2xf32, #tpu.memory_space<vmem>>, %arg5: memref<2x16x2xf32, #tpu.memory_space<vmem>>, %arg6: memref<2x16x1xf32, #tpu.memory_space<vmem>>, %arg7: memref<2x512x256xf32, #tpu.memory_space<vmem>>, %arg8: memref<2x1x1xf32, #tpu.memory_space<vmem>>, %arg9: memref<32x16xf32, #tpu.memory_space<vmem>>, %arg10: memref<32x16xf32, #tpu.memory_space<vmem>>, %arg11: memref<32x1xf32, #tpu.memory_space<vmem>>, %arg12: memref<32x16xf32, #tpu.memory_space<vmem>>, %arg13: memref<32x16xf32, #tpu.memory_space<vmem>>, %arg14: memref<32x1xf32, #tpu.memory_space<vmem>>, %arg15: memref<1x32x256xf32, #tpu.memory_space<vmem>>) attributes {dimension_semantics = [#tpu.dimension_semantics<parallel>], iteration_bounds = array<i64: 2>, scalar_prefetch = 0 : i64, scratch_operands = 0 : i64, tpu.core_type = #tpu.core_type<tc>, window_params = [{transform_indices = @transform_0, window_bounds = array<i64: 1, 16, 256>}, {transform_indices = @transform_1, window_bounds = array<i64: 1, 16, 256>}, {pipeline_mode = #tpu.pipeline_mode<synchronous>, transform_indices = @transform_2, window_bounds = array<i64: 2, 16, 2>}, {pipeline_mode = #tpu.pipeline_mode<synchronous>, transform_indices = @transform_3, window_bounds = array<i64: 2, 1, 2>}, {pipeline_mode = #tpu.pipeline_mode<synchronous>, transform_indices = @transform_4, window_bounds = array<i64: 2, 16, 2>}, {pipeline_mode = #tpu.pipeline_mode<synchronous>, transform_indices = @transform_5, window_bounds = array<i64: 2, 16, 1>}, {pipeline_mode = #tpu.pipeline_mode<synchronous>, transform_indices = @transform_6, window_bounds = array<i64: 2, 512, 256>}, {pipeline_mode = #tpu.pipeline_mode<synchronous>, transform_indices = @transform_7, window_bounds = array<i64: 2, 1, 1>}, {pipeline_mode = #tpu.pipeline_mode<synchronous>, transform_indices = @transform_8, window_bounds = array<i64: 32, 16>}, {pipeline_mode = #tpu.pipeline_mode<synchronous>, transform_indices = @transform_9, window_bounds = array<i64: 32, 16>}, {pipeline_mode = #tpu.pipeline_mode<synchronous>, transform_indices = @transform_10, window_bounds = array<i64: 32, 1>}, {pipeline_mode = #tpu.pipeline_mode<synchronous>, transform_indices = @transform_11, window_bounds = array<i64: 32, 16>}, {pipeline_mode = #tpu.pipeline_mode<synchronous>, transform_indices = @transform_12, window_bounds = array<i64: 32, 16>}, {pipeline_mode = #tpu.pipeline_mode<synchronous>, transform_indices = @transform_13, window_bounds = array<i64: 32, 1>}, {transform_indices = @transform_14, window_bounds = array<i64: 1, 32, 256>}]} {
    %c0 = arith.constant 0 : index
    %c0_0 = arith.constant 0 : index
    %c0_1 = arith.constant 0 : index
    %0 = vector.load %arg1[%c0, %c0_0, %c0_1] : memref<1x16x256xf32, #tpu.memory_space<vmem>>, vector<1x16x256xf32>
    %1 = vector.shape_cast %0 : vector<1x16x256xf32> to vector<16x256xf32>
    %c0_2 = arith.constant 0 : index
    %c0_3 = arith.constant 0 : index
    %c0_4 = arith.constant 0 : index
    %2 = vector.load %arg2[%c0_2, %c0_3, %c0_4] : memref<1x16x256xf32, #tpu.memory_space<vmem>>, vector<1x16x256xf32>
    %3 = vector.shape_cast %2 : vector<1x16x256xf32> to vector<16x256xf32>
    %c0_5 = arith.constant 0 : index
    %c0_6 = arith.constant 0 : index
    %4 = vector.load %arg9[%c0_5, %c0_6] : memref<32x16xf32, #tpu.memory_space<vmem>>, vector<32x16xf32>
    %cst = arith.constant dense<0.000000e+00> : vector<32x256xf32>
    %5 = tpu.matmul %4, %1, %cst {dimension_numbers = #tpu.dot_dimension_numbers<[1], [0], [0], [1], [0, 0, 1, 1], [], []>} : vector<32x16xf32>, vector<16x256xf32>, vector<32x256xf32> -> vector<32x256xf32>
    %c0_7 = arith.constant 0 : index
    %c0_8 = arith.constant 0 : index
    %6 = vector.load %arg10[%c0_7, %c0_8] : memref<32x16xf32, #tpu.memory_space<vmem>>, vector<32x16xf32>
    %cst_9 = arith.constant dense<0.000000e+00> : vector<32x256xf32>
    %7 = tpu.matmul %6, %3, %cst_9 {dimension_numbers = #tpu.dot_dimension_numbers<[1], [0], [0], [1], [0, 0, 1, 1], [], []>} : vector<32x16xf32>, vector<16x256xf32>, vector<32x256xf32> -> vector<32x256xf32>
    %8 = arith.addf %5, %7 : vector<32x256xf32>
    %c0_10 = arith.constant 0 : index
    %c0_11 = arith.constant 0 : index
    %9 = vector.load %arg11[%c0_10, %c0_11] : memref<32x1xf32, #tpu.memory_space<vmem>>, vector<32x1xf32>
    %10 = vector.broadcast %9 : vector<32x1xf32> to vector<32x256xf32>
    %11 = arith.addf %8, %10 : vector<32x256xf32>
    %cst_12 = arith.constant 0.000000e+00 : f32
    %12 = vector.broadcast %cst_12 : f32 to vector<32x256xf32>
    %13 = arith.maximumf %11, %12 : vector<32x256xf32>
    %cst_13 = arith.constant dense<0.000000e+00> : vector<16xf32>
    %14 = vector.multi_reduction <add>, %1, %cst_13 [1] : vector<16x256xf32> to vector<16xf32>
    %15 = vector.shape_cast %14 : vector<16xf32> to vector<16x1xf32>
    %cst_14 = arith.constant 2.560000e+02 : f32
    %16 = vector.broadcast %cst_14 : f32 to vector<16x1xf32>
    %17 = arith.divf %15, %16 : vector<16x1xf32>
    %cst_15 = arith.constant dense<0xFF800000> : vector<16xf32>
    %18 = vector.multi_reduction <maximumf>, %1, %cst_15 [1] : vector<16x256xf32> to vector<16xf32>
    %19 = vector.shape_cast %18 : vector<16xf32> to vector<16x1xf32>
    %c0_16 = arith.constant 0 : index
    %c0_17 = arith.constant 0 : index
    %c0_18 = arith.constant 0 : index
    %20 = vector.load %arg3[%c0_16, %c0_17, %c0_18] : memref<2x16x2xf32, #tpu.memory_space<vmem>>, vector<1x16x2xf32>
    %21 = vector.shape_cast %20 : vector<1x16x2xf32> to vector<16x2xf32>
    %c0_19 = arith.constant 0 : index
    %c0_20 = arith.constant 0 : index
    %c0_21 = arith.constant 0 : index
    %22 = vector.load %arg4[%c0_19, %c0_20, %c0_21] : memref<2x1x2xf32, #tpu.memory_space<vmem>>, vector<1x1x2xf32>
    %23 = vector.shape_cast %22 : vector<1x1x2xf32> to vector<1x2xf32>
    %c0_22 = arith.constant 0 : index
    %c0_23 = arith.constant 0 : index
    %c0_24 = arith.constant 0 : index
    %24 = vector.load %arg5[%c0_22, %c0_23, %c0_24] : memref<2x16x2xf32, #tpu.memory_space<vmem>>, vector<1x16x2xf32>
    %25 = vector.shape_cast %24 : vector<1x16x2xf32> to vector<16x2xf32>
    %c0_25 = arith.constant 0 : index
    %c0_26 = arith.constant 0 : index
    %c0_27 = arith.constant 0 : index
    %26 = vector.load %arg6[%c0_25, %c0_26, %c0_27] : memref<2x16x1xf32, #tpu.memory_space<vmem>>, vector<1x16x1xf32>
    %27 = vector.shape_cast %26 : vector<1x16x1xf32> to vector<16x1xf32>
    %28 = vector.broadcast %17 : vector<16x1xf32> to vector<16x2xf32>
    %29 = arith.mulf %21, %28 : vector<16x2xf32>
    %cst_28 = arith.constant dense<0.000000e+00> : vector<2xf32>
    %30 = vector.multi_reduction <add>, %29, %cst_28 [0] : vector<16x2xf32> to vector<2xf32>
    %31 = vector.shape_cast %30 : vector<2xf32> to vector<1x2xf32>
    %32 = arith.addf %31, %23 : vector<1x2xf32>
    %cst_29 = arith.constant 0.000000e+00 : f32
    %33 = vector.broadcast %cst_29 : f32 to vector<1x2xf32>
    %34 = arith.maximumf %32, %33 : vector<1x2xf32>
    %35 = vector.broadcast %34 : vector<1x2xf32> to vector<16x2xf32>
    %36 = arith.mulf %25, %35 : vector<16x2xf32>
    %cst_30 = arith.constant dense<0.000000e+00> : vector<16xf32>
    %37 = vector.multi_reduction <add>, %36, %cst_30 [1] : vector<16x2xf32> to vector<16xf32>
    %38 = vector.shape_cast %37 : vector<16xf32> to vector<16x1xf32>
    %39 = arith.addf %38, %27 : vector<16x1xf32>
    %40 = vector.broadcast %19 : vector<16x1xf32> to vector<16x2xf32>
    %41 = arith.mulf %21, %40 : vector<16x2xf32>
    %cst_31 = arith.constant dense<0.000000e+00> : vector<2xf32>
    %42 = vector.multi_reduction <add>, %41, %cst_31 [0] : vector<16x2xf32> to vector<2xf32>
    %43 = vector.shape_cast %42 : vector<2xf32> to vector<1x2xf32>
    %44 = arith.addf %43, %23 : vector<1x2xf32>
    %cst_32 = arith.constant 0.000000e+00 : f32
    %45 = vector.broadcast %cst_32 : f32 to vector<1x2xf32>
    %46 = arith.maximumf %44, %45 : vector<1x2xf32>
    %47 = vector.broadcast %46 : vector<1x2xf32> to vector<16x2xf32>
    %48 = arith.mulf %25, %47 : vector<16x2xf32>
    %cst_33 = arith.constant dense<0.000000e+00> : vector<16xf32>
    %49 = vector.multi_reduction <add>, %48, %cst_33 [1] : vector<16x2xf32> to vector<16xf32>
    %50 = vector.shape_cast %49 : vector<16xf32> to vector<16x1xf32>
    %51 = arith.addf %50, %27 : vector<16x1xf32>
    %52 = arith.addf %39, %51 : vector<16x1xf32>
    %53 = arith.negf %52 : vector<16x1xf32>
    %54 = math.exp %53 : vector<16x1xf32>
    %cst_34 = arith.constant 1.000000e+00 : f32
    %55 = vector.broadcast %cst_34 : f32 to vector<16x1xf32>
    %56 = arith.addf %55, %54 : vector<16x1xf32>
    %57 = arith.divf %55, %56 : vector<16x1xf32>
    %58 = vector.broadcast %57 : vector<16x1xf32> to vector<16x256xf32>
    %59 = arith.mulf %1, %58 : vector<16x256xf32>
    %cst_35 = arith.constant dense<0.000000e+00> : vector<256xf32>
    %60 = vector.multi_reduction <add>, %59, %cst_35 [0] : vector<16x256xf32> to vector<256xf32>
    %61 = vector.shape_cast %60 : vector<256xf32> to vector<1x256xf32>
    %cst_36 = arith.constant 1.600000e+01 : f32
    %62 = vector.broadcast %cst_36 : f32 to vector<1x256xf32>
    %63 = arith.divf %61, %62 : vector<1x256xf32>
    %cst_37 = arith.constant dense<0xFF800000> : vector<256xf32>
    %64 = vector.multi_reduction <maximumf>, %59, %cst_37 [0] : vector<16x256xf32> to vector<256xf32>
    %65 = vector.shape_cast %64 : vector<256xf32> to vector<1x256xf32>
    %c0_38 = arith.constant 0 : index
    %c0_39 = arith.constant 0 : index
    %c0_40 = arith.constant 0 : index
    %66 = vector.load %arg7[%c0_38, %c0_39, %c0_40] : memref<2x512x256xf32, #tpu.memory_space<vmem>>, vector<1x256x256xf32>
    %67 = vector.shape_cast %66 : vector<1x256x256xf32> to vector<256x256xf32>
    %cst_41 = arith.constant dense<0.000000e+00> : vector<1x256xf32>
    %68 = tpu.matmul %63, %67, %cst_41 {dimension_numbers = #tpu.dot_dimension_numbers<[1], [0], [0], [1], [0, 0, 1, 1], [], []>} : vector<1x256xf32>, vector<256x256xf32>, vector<1x256xf32> -> vector<1x256xf32>
    %c0_42 = arith.constant 0 : index
    %c256 = arith.constant 256 : index
    %c0_43 = arith.constant 0 : index
    %69 = vector.load %arg7[%c0_42, %c256, %c0_43] : memref<2x512x256xf32, #tpu.memory_space<vmem>>, vector<1x256x256xf32>
    %70 = vector.shape_cast %69 : vector<1x256x256xf32> to vector<256x256xf32>
    %cst_44 = arith.constant dense<0.000000e+00> : vector<1x256xf32>
    %71 = tpu.matmul %65, %70, %cst_44 {dimension_numbers = #tpu.dot_dimension_numbers<[1], [0], [0], [1], [0, 0, 1, 1], [], []>} : vector<1x256xf32>, vector<256x256xf32>, vector<1x256xf32> -> vector<1x256xf32>
    %72 = arith.addf %68, %71 : vector<1x256xf32>
    %c0_45 = arith.constant 0 : index
    %c0_46 = arith.constant 0 : index
    %c0_47 = arith.constant 0 : index
    %73 = vector.load %arg8[%c0_45, %c0_46, %c0_47] : memref<2x1x1xf32, #tpu.memory_space<vmem>>, vector<1x1x1xf32>
    %74 = vector.shape_cast %73 : vector<1x1x1xf32> to vector<1x1xf32>
    %75 = vector.broadcast %74 : vector<1x1xf32> to vector<1x256xf32>
    %76 = arith.addf %72, %75 : vector<1x256xf32>
    %77 = arith.negf %76 : vector<1x256xf32>
    %78 = math.exp %77 : vector<1x256xf32>
    %cst_48 = arith.constant 1.000000e+00 : f32
    %79 = vector.broadcast %cst_48 : f32 to vector<1x256xf32>
    %80 = arith.addf %79, %78 : vector<1x256xf32>
    %81 = arith.divf %79, %80 : vector<1x256xf32>
    %82 = vector.broadcast %81 : vector<1x256xf32> to vector<16x256xf32>
    %83 = arith.mulf %59, %82 : vector<16x256xf32>
    %cst_49 = arith.constant dense<0.000000e+00> : vector<16xf32>
    %84 = vector.multi_reduction <add>, %3, %cst_49 [1] : vector<16x256xf32> to vector<16xf32>
    %85 = vector.shape_cast %84 : vector<16xf32> to vector<16x1xf32>
    %cst_50 = arith.constant 2.560000e+02 : f32
    %86 = vector.broadcast %cst_50 : f32 to vector<16x1xf32>
    %87 = arith.divf %85, %86 : vector<16x1xf32>
    %cst_51 = arith.constant dense<0xFF800000> : vector<16xf32>
    %88 = vector.multi_reduction <maximumf>, %3, %cst_51 [1] : vector<16x256xf32> to vector<16xf32>
    %89 = vector.shape_cast %88 : vector<16xf32> to vector<16x1xf32>
    %c1 = arith.constant 1 : index
    %c0_52 = arith.constant 0 : index
    %c0_53 = arith.constant 0 : index
    %90 = vector.load %arg3[%c1, %c0_52, %c0_53] : memref<2x16x2xf32, #tpu.memory_space<vmem>>, vector<1x16x2xf32>
    %91 = vector.shape_cast %90 : vector<1x16x2xf32> to vector<16x2xf32>
    %c1_54 = arith.constant 1 : index
    %c0_55 = arith.constant 0 : index
    %c0_56 = arith.constant 0 : index
    %92 = vector.load %arg4[%c1_54, %c0_55, %c0_56] : memref<2x1x2xf32, #tpu.memory_space<vmem>>, vector<1x1x2xf32>
    %93 = vector.shape_cast %92 : vector<1x1x2xf32> to vector<1x2xf32>
    %c1_57 = arith.constant 1 : index
    %c0_58 = arith.constant 0 : index
    %c0_59 = arith.constant 0 : index
    %94 = vector.load %arg5[%c1_57, %c0_58, %c0_59] : memref<2x16x2xf32, #tpu.memory_space<vmem>>, vector<1x16x2xf32>
    %95 = vector.shape_cast %94 : vector<1x16x2xf32> to vector<16x2xf32>
    %c1_60 = arith.constant 1 : index
    %c0_61 = arith.constant 0 : index
    %c0_62 = arith.constant 0 : index
    %96 = vector.load %arg6[%c1_60, %c0_61, %c0_62] : memref<2x16x1xf32, #tpu.memory_space<vmem>>, vector<1x16x1xf32>
    %97 = vector.shape_cast %96 : vector<1x16x1xf32> to vector<16x1xf32>
    %98 = vector.broadcast %87 : vector<16x1xf32> to vector<16x2xf32>
    %99 = arith.mulf %91, %98 : vector<16x2xf32>
    %cst_63 = arith.constant dense<0.000000e+00> : vector<2xf32>
    %100 = vector.multi_reduction <add>, %99, %cst_63 [0] : vector<16x2xf32> to vector<2xf32>
    %101 = vector.shape_cast %100 : vector<2xf32> to vector<1x2xf32>
    %102 = arith.addf %101, %93 : vector<1x2xf32>
    %cst_64 = arith.constant 0.000000e+00 : f32
    %103 = vector.broadcast %cst_64 : f32 to vector<1x2xf32>
    %104 = arith.maximumf %102, %103 : vector<1x2xf32>
    %105 = vector.broadcast %104 : vector<1x2xf32> to vector<16x2xf32>
    %106 = arith.mulf %95, %105 : vector<16x2xf32>
    %cst_65 = arith.constant dense<0.000000e+00> : vector<16xf32>
    %107 = vector.multi_reduction <add>, %106, %cst_65 [1] : vector<16x2xf32> to vector<16xf32>
    %108 = vector.shape_cast %107 : vector<16xf32> to vector<16x1xf32>
    %109 = arith.addf %108, %97 : vector<16x1xf32>
    %110 = vector.broadcast %89 : vector<16x1xf32> to vector<16x2xf32>
    %111 = arith.mulf %91, %110 : vector<16x2xf32>
    %cst_66 = arith.constant dense<0.000000e+00> : vector<2xf32>
    %112 = vector.multi_reduction <add>, %111, %cst_66 [0] : vector<16x2xf32> to vector<2xf32>
    %113 = vector.shape_cast %112 : vector<2xf32> to vector<1x2xf32>
    %114 = arith.addf %113, %93 : vector<1x2xf32>
    %cst_67 = arith.constant 0.000000e+00 : f32
    %115 = vector.broadcast %cst_67 : f32 to vector<1x2xf32>
    %116 = arith.maximumf %114, %115 : vector<1x2xf32>
    %117 = vector.broadcast %116 : vector<1x2xf32> to vector<16x2xf32>
    %118 = arith.mulf %95, %117 : vector<16x2xf32>
    %cst_68 = arith.constant dense<0.000000e+00> : vector<16xf32>
    %119 = vector.multi_reduction <add>, %118, %cst_68 [1] : vector<16x2xf32> to vector<16xf32>
    %120 = vector.shape_cast %119 : vector<16xf32> to vector<16x1xf32>
    %121 = arith.addf %120, %97 : vector<16x1xf32>
    %122 = arith.addf %109, %121 : vector<16x1xf32>
    %123 = arith.negf %122 : vector<16x1xf32>
    %124 = math.exp %123 : vector<16x1xf32>
    %cst_69 = arith.constant 1.000000e+00 : f32
    %125 = vector.broadcast %cst_69 : f32 to vector<16x1xf32>
    %126 = arith.addf %125, %124 : vector<16x1xf32>
    %127 = arith.divf %125, %126 : vector<16x1xf32>
    %128 = vector.broadcast %127 : vector<16x1xf32> to vector<16x256xf32>
    %129 = arith.mulf %3, %128 : vector<16x256xf32>
    %cst_70 = arith.constant dense<0.000000e+00> : vector<256xf32>
    %130 = vector.multi_reduction <add>, %129, %cst_70 [0] : vector<16x256xf32> to vector<256xf32>
    %131 = vector.shape_cast %130 : vector<256xf32> to vector<1x256xf32>
    %cst_71 = arith.constant 1.600000e+01 : f32
    %132 = vector.broadcast %cst_71 : f32 to vector<1x256xf32>
    %133 = arith.divf %131, %132 : vector<1x256xf32>
    %cst_72 = arith.constant dense<0xFF800000> : vector<256xf32>
    %134 = vector.multi_reduction <maximumf>, %129, %cst_72 [0] : vector<16x256xf32> to vector<256xf32>
    %135 = vector.shape_cast %134 : vector<256xf32> to vector<1x256xf32>
    %c1_73 = arith.constant 1 : index
    %c0_74 = arith.constant 0 : index
    %c0_75 = arith.constant 0 : index
    %136 = vector.load %arg7[%c1_73, %c0_74, %c0_75] : memref<2x512x256xf32, #tpu.memory_space<vmem>>, vector<1x256x256xf32>
    %137 = vector.shape_cast %136 : vector<1x256x256xf32> to vector<256x256xf32>
    %cst_76 = arith.constant dense<0.000000e+00> : vector<1x256xf32>
    %138 = tpu.matmul %133, %137, %cst_76 {dimension_numbers = #tpu.dot_dimension_numbers<[1], [0], [0], [1], [0, 0, 1, 1], [], []>} : vector<1x256xf32>, vector<256x256xf32>, vector<1x256xf32> -> vector<1x256xf32>
    %c1_77 = arith.constant 1 : index
    %c256_78 = arith.constant 256 : index
    %c0_79 = arith.constant 0 : index
    %139 = vector.load %arg7[%c1_77, %c256_78, %c0_79] : memref<2x512x256xf32, #tpu.memory_space<vmem>>, vector<1x256x256xf32>
    %140 = vector.shape_cast %139 : vector<1x256x256xf32> to vector<256x256xf32>
    %cst_80 = arith.constant dense<0.000000e+00> : vector<1x256xf32>
    %141 = tpu.matmul %135, %140, %cst_80 {dimension_numbers = #tpu.dot_dimension_numbers<[1], [0], [0], [1], [0, 0, 1, 1], [], []>} : vector<1x256xf32>, vector<256x256xf32>, vector<1x256xf32> -> vector<1x256xf32>
    %142 = arith.addf %138, %141 : vector<1x256xf32>
    %c1_81 = arith.constant 1 : index
    %c0_82 = arith.constant 0 : index
    %c0_83 = arith.constant 0 : index
    %143 = vector.load %arg8[%c1_81, %c0_82, %c0_83] : memref<2x1x1xf32, #tpu.memory_space<vmem>>, vector<1x1x1xf32>
    %144 = vector.shape_cast %143 : vector<1x1x1xf32> to vector<1x1xf32>
    %145 = vector.broadcast %144 : vector<1x1xf32> to vector<1x256xf32>
    %146 = arith.addf %142, %145 : vector<1x256xf32>
    %147 = arith.negf %146 : vector<1x256xf32>
    %148 = math.exp %147 : vector<1x256xf32>
    %cst_84 = arith.constant 1.000000e+00 : f32
    %149 = vector.broadcast %cst_84 : f32 to vector<1x256xf32>
    %150 = arith.addf %149, %148 : vector<1x256xf32>
    %151 = arith.divf %149, %150 : vector<1x256xf32>
    %152 = vector.broadcast %151 : vector<1x256xf32> to vector<16x256xf32>
    %153 = arith.mulf %129, %152 : vector<16x256xf32>
    %c0_85 = arith.constant 0 : index
    %c0_86 = arith.constant 0 : index
    %154 = vector.load %arg12[%c0_85, %c0_86] : memref<32x16xf32, #tpu.memory_space<vmem>>, vector<32x16xf32>
    %cst_87 = arith.constant dense<0.000000e+00> : vector<32x256xf32>
    %155 = tpu.matmul %154, %83, %cst_87 {dimension_numbers = #tpu.dot_dimension_numbers<[1], [0], [0], [1], [0, 0, 1, 1], [], []>} : vector<32x16xf32>, vector<16x256xf32>, vector<32x256xf32> -> vector<32x256xf32>
    %c0_88 = arith.constant 0 : index
    %c0_89 = arith.constant 0 : index
    %156 = vector.load %arg13[%c0_88, %c0_89] : memref<32x16xf32, #tpu.memory_space<vmem>>, vector<32x16xf32>
    %cst_90 = arith.constant dense<0.000000e+00> : vector<32x256xf32>
    %157 = tpu.matmul %156, %153, %cst_90 {dimension_numbers = #tpu.dot_dimension_numbers<[1], [0], [0], [1], [0, 0, 1, 1], [], []>} : vector<32x16xf32>, vector<16x256xf32>, vector<32x256xf32> -> vector<32x256xf32>
    %158 = arith.addf %155, %157 : vector<32x256xf32>
    %c0_91 = arith.constant 0 : index
    %c0_92 = arith.constant 0 : index
    %159 = vector.load %arg14[%c0_91, %c0_92] : memref<32x1xf32, #tpu.memory_space<vmem>>, vector<32x1xf32>
    %160 = vector.broadcast %159 : vector<32x1xf32> to vector<32x256xf32>
    %161 = arith.addf %158, %160 : vector<32x256xf32>
    %cst_93 = arith.constant 0.000000e+00 : f32
    %162 = vector.broadcast %cst_93 : f32 to vector<32x256xf32>
    %163 = arith.maximumf %161, %162 : vector<32x256xf32>
    %164 = arith.mulf %13, %163 : vector<32x256xf32>
    %165 = arith.addf %164, %13 : vector<32x256xf32>
    %cst_94 = arith.constant 0.000000e+00 : f32
    %166 = vector.broadcast %cst_94 : f32 to vector<32x256xf32>
    %167 = arith.maximumf %165, %166 : vector<32x256xf32>
    %c0_95 = arith.constant 0 : index
    %c0_96 = arith.constant 0 : index
    %c0_97 = arith.constant 0 : index
    %168 = vector.load %arg15[%c0_95, %c0_96, %c0_97] : memref<1x32x256xf32, #tpu.memory_space<vmem>>, vector<1x32x256xf32>
    %169 = vector.shape_cast %168 : vector<1x32x256xf32> to vector<32x256xf32>
    %170 = vector.shape_cast %167 : vector<32x256xf32> to vector<1x32x256xf32>
    tpu.vector_store %arg15[%c0_95, %c0_96, %c0_97], %170 {strides = array<i32>} : memref<1x32x256xf32, #tpu.memory_space<vmem>>, vector<1x32x256xf32>,
    return
  }
  func.func @transform_0(%arg0: i32) -> (i32, i32, i32) {
    %c0_i32 = arith.constant 0 : i32
    %c0_i32_0 = arith.constant 0 : i32
    %c0_i32_1 = arith.constant 0 : i32
    return %arg0, %c0_i32, %c0_i32_0 : i32, i32, i32
  }
  func.func @transform_1(%arg0: i32) -> (i32, i32, i32) {
    %c0_i32 = arith.constant 0 : i32
    %c0_i32_0 = arith.constant 0 : i32
    %c0_i32_1 = arith.constant 0 : i32
    return %arg0, %c0_i32, %c0_i32_0 : i32, i32, i32
  }
  func.func @transform_2(%arg0: i32) -> (i32, i32, i32) {
    %c0_i32 = arith.constant 0 : i32
    %c0_i32_0 = arith.constant 0 : i32
    %c0_i32_1 = arith.constant 0 : i32
    %c0_i32_2 = arith.constant 0 : i32
    return %c0_i32, %c0_i32_0, %c0_i32_1 : i32, i32, i32
  }
  func.func @transform_3(%arg0: i32) -> (i32, i32, i32) {
    %c0_i32 = arith.constant 0 : i32
    %c0_i32_0 = arith.constant 0 : i32
    %c0_i32_1 = arith.constant 0 : i32
    %c0_i32_2 = arith.constant 0 : i32
    return %c0_i32, %c0_i32_0, %c0_i32_1 : i32, i32, i32
  }
  func.func @transform_4(%arg0: i32) -> (i32, i32, i32) {
    %c0_i32 = arith.constant 0 : i32
    %c0_i32_0 = arith.constant 0 : i32
    %c0_i32_1 = arith.constant 0 : i32
    %c0_i32_2 = arith.constant 0 : i32
    return %c0_i32, %c0_i32_0, %c0_i32_1 : i32, i32, i32
  }
  func.func @transform_5(%arg0: i32) -> (i32, i32, i32) {
    %c0_i32 = arith.constant 0 : i32
    %c0_i32_0 = arith.constant 0 : i32
    %c0_i32_1 = arith.constant 0 : i32
    %c0_i32_2 = arith.constant 0 : i32
    return %c0_i32, %c0_i32_0, %c0_i32_1 : i32, i32, i32
  }
  func.func @transform_6(%arg0: i32) -> (i32, i32, i32) {
    %c0_i32 = arith.constant 0 : i32
    %c0_i32_0 = arith.constant 0 : i32
    %c0_i32_1 = arith.constant 0 : i32
    %c0_i32_2 = arith.constant 0 : i32
    return %c0_i32, %c0_i32_0, %c0_i32_1 : i32, i32, i32
  }
  func.func @transform_7(%arg0: i32) -> (i32, i32, i32) {
    %c0_i32 = arith.constant 0 : i32
    %c0_i32_0 = arith.constant 0 : i32
    %c0_i32_1 = arith.constant 0 : i32
    %c0_i32_2 = arith.constant 0 : i32
    return %c0_i32, %c0_i32_0, %c0_i32_1 : i32, i32, i32
  }
  func.func @transform_8(%arg0: i32) -> (i32, i32) {
    %c0_i32 = arith.constant 0 : i32
    %c0_i32_0 = arith.constant 0 : i32
    %c0_i32_1 = arith.constant 0 : i32
    return %c0_i32, %c0_i32_0 : i32, i32
  }
  func.func @transform_9(%arg0: i32) -> (i32, i32) {
    %c0_i32 = arith.constant 0 : i32
    %c0_i32_0 = arith.constant 0 : i32
    %c0_i32_1 = arith.constant 0 : i32
    return %c0_i32, %c0_i32_0 : i32, i32
  }
  func.func @transform_10(%arg0: i32) -> (i32, i32) {
    %c0_i32 = arith.constant 0 : i32
    %c0_i32_0 = arith.constant 0 : i32
    %c0_i32_1 = arith.constant 0 : i32
    return %c0_i32, %c0_i32_0 : i32, i32
  }
  func.func @transform_11(%arg0: i32) -> (i32, i32) {
    %c0_i32 = arith.constant 0 : i32
    %c0_i32_0 = arith.constant 0 : i32
    %c0_i32_1 = arith.constant 0 : i32
    return %c0_i32, %c0_i32_0 : i32, i32
  }
  func.func @transform_12(%arg0: i32) -> (i32, i32) {
    %c0_i32 = arith.constant 0 : i32
    %c0_i32_0 = arith.constant 0 : i32
    %c0_i32_1 = arith.constant 0 : i32
    return %c0_i32, %c0_i32_0 : i32, i32
  }
  func.func @transform_13(%arg0: i32) -> (i32, i32) {
    %c0_i32 = arith.constant 0 : i32
    %c0_i32_0 = arith.constant 0 : i32
    %c0_i32_1 = arith.constant 0 : i32
    return %c0_i32, %c0_i32_0 : i32, i32
  }
  func.func @transform_14(%arg0: i32) -> (i32, i32, i32) {
    %c0_i32 = arith.constant 0 : i32
    %c0_i32_0 = arith.constant 0 : i32
    %c0_i32_1 = arith.constant 0 : i32
    return %arg0, %c0_i32, %c0_i32_0 : i32, i32, i32
  }
}

</mosaic_0001>

<llo_original>
// kernel: tpu_custom_call.1
$region0: #{tpu_custom_call.1}
  #allocation0 [shape = 'u32[]', space=smem, size = 0x4, offset = 0x4, fixed_abs, tag = 'smem constant byte address 0x4 - core index']
  #allocation1 [shape = 'u32[144,128]{1,0:T(1,128)}', space=vmem, size = 0x12000, scoped, tag = 'internal scratch']
  %s0 = inlined_call_operand.vmem [shape: f32[2,16,256], index: 0, kind: input, shape index: {}]
  %s1 = inlined_call_operand.vmem [shape: f32[2,16,256], index: 1, kind: input, shape index: {}]
  %s2 = inlined_call_operand.vmem [shape: f32[2,16,2], index: 2, kind: input, shape index: {}]
  %s3 = inlined_call_operand.vmem [shape: f32[2,1,2], index: 3, kind: input, shape index: {}]
  %s4 = inlined_call_operand.vmem [shape: f32[2,16,2], index: 4, kind: input, shape index: {}]
  %s5 = inlined_call_operand.vmem [shape: f32[2,16,1], index: 5, kind: input, shape index: {}]
  %s6 = inlined_call_operand.hbm [shape: f32[2,512,256], index: 6, kind: input, shape index: {}]
  %s7 = inlined_call_operand.vmem [shape: f32[2,1,1], index: 7, kind: input, shape index: {}]
  %s8 = inlined_call_operand.vmem [shape: f32[32,16], index: 8, kind: input, shape index: {}]
  %s9 = inlined_call_operand.vmem [shape: f32[32,16], index: 9, kind: input, shape index: {}]
  %s10 = inlined_call_operand.vmem [shape: f32[32,1], index: 10, kind: input, shape index: {}]
  %s11 = inlined_call_operand.vmem [shape: f32[32,16], index: 11, kind: input, shape index: {}]
  %s12 = inlined_call_operand.vmem [shape: f32[32,16], index: 12, kind: input, shape index: {}]
  %s13 = inlined_call_operand.vmem [shape: f32[32,1], index: 13, kind: input, shape index: {}]
  %s14 = inlined_call_operand.hbm [shape: f32[2,32,256], index: 14, kind: output, shape index: {}]
  %s15 = sld [smem:[#allocation0]]
  $region93: #{tpu_custom_call.1} parent=0
    _
  %s17 = ssub.s32 1, %s15
  %s18 = scalar_select 0, %s17, %s15
  $region1: #{tpu_custom_call.1} parent=0
    #allocation2 [shape = 'u8[1048576]{0}', space=vmem, size = 0x100000, scoped, tag = 'input window, operand 6, single buffered']
    #allocation3 [shape = 's32[2]{0}', space=sflag, size = 0x8, scoped, tag = 'scoped memory for tpu_custom_call.1']
    #allocation4 [shape = 's32[2]{0}', space=sflag, size = 0x8, scoped, tag = 'scoped memory for tpu_custom_call.1']
    #allocation5 [shape = 'u8[65536]{0}', space=vmem, size = 0x10000, scoped, tag = 'output window, operand 0']
    %19 = vsyncpa [#allocation3], 0
    %20 = vsyncpa [#allocation4], 0
    %s21 = scalar_lea.sflag [#allocation4], 1
    %22 = vsyncpa %s21, 0
    loop: start=0, step=1, limit=4
    $region2: #{tpu_custom_call.1} parent=1 // loop_pre_header
      _
    $region3: #{tpu_custom_call.1} parent=1 // loop_header
      %s24 = sphi 0, %s28
      %p25 = scmp.ge.s32.totalorder %s24, 4
      %s34 = sphi 0, %s36
      %s37 = sphi 0, %s34
      %s38 = sphi 0, %s37
      %s54 = sphi 0, %s38
      %s60 = sphi 0, %s62
      %s63 = sphi 0, %s60
      %s64 = sphi 0, %s63
      %s80 = sphi 0, %s64
      %s84 = sphi 0, %s84
      %s86 = sphi 0, %s84
      %s87 = sphi 0, %s86
      %s101 = sphi 0, %s87
      %s105 = sphi 0, %s105
      %s107 = sphi 0, %s105
      %s108 = sphi 0, %s107
      %s122 = sphi 0, %s108
      %s126 = sphi 0, %s126
      %s128 = sphi 0, %s126
      %s129 = sphi 0, %s128
      %s143 = sphi 0, %s129
      %s147 = sphi 0, %s147
      %s149 = sphi 0, %s147
      %s150 = sphi 0, %s149
      %s164 = sphi 0, %s150
      %s168 = sphi 0, %s168
      %s170 = sphi 0, %s168
      %s171 = sphi 0, %s170
      %s185 = sphi 0, %s171
      %s189 = sphi 0, %s189
      %s191 = sphi 0, %s189
      %s192 = sphi 0, %s191
      %s206 = sphi 0, %s192
      %s210 = sphi 0, %s210
      %s212 = sphi 0, %s210
      %s213 = sphi 0, %s212
      %s227 = sphi 0, %s213
      %s231 = sphi 0, %s231
      %s233 = sphi 0, %s231
      %s234 = sphi 0, %s233
      %s248 = sphi 0, %s234
      %s252 = sphi 0, %s252
      %s254 = sphi 0, %s252
      %s255 = sphi 0, %s254
      %s269 = sphi 0, %s255
      %s273 = sphi 0, %s273
      %s275 = sphi 0, %s273
      %s276 = sphi 0, %s275
      %s290 = sphi 0, %s276
      %s294 = sphi 0, %s294
      %s296 = sphi 0, %s294
      %s297 = sphi 0, %s296
      %s311 = sphi 0, %s297
      %s315 = sphi 0, %s315
      %s317 = sphi 0, %s315
      %s318 = sphi 0, %s317
      %s332 = sphi 0, %s318
      %s338 = sphi 0, %s340
      %s341 = sphi 0, %s338
      %s342 = sphi 0, %s341
      %s358 = sphi 0, %s342
    $region4: #{tpu_custom_call.1} parent=1 // loop_header_branch
      %27 = sbr.rel (%p25) target = $region8
    $region5: #{tpu_custom_call.1} parent=1 // loop_body
      %s29 = ssub.s32 %s24, 1
      %s30 = ssub.s32 %s24, 2
      %s31 = sadd.s32 %s24, 1
      %s32 = ssub.s32 %s24, %s31
      %p33 = scmp.eq.s32.totalorder %s32, 0
      %s35 = sadd.s32 %s34, 1
      %s36 = scalar_select %p33, %s34, %s35
      %p39 = pneg %p33
      %p40 = scmp.eq.s32.totalorder %s24, 1
      %p41 = por %p39, %p40
      %p42 = scmp.ne.s32.totalorder %s34, %s37
      %p43 = scmp.eq.s32.totalorder %s24, 0
      %p44 = por %p42, %p43
      %p45 = scmp.ne.s32.totalorder %s34, %s37
      %p46 = scmp.eq.s32.totalorder %s29, 1
      %p47 = por %p45, %p46
      %p48 = scmp.ne.s32.totalorder %s37, %s38
      %p49 = scmp.eq.s32.totalorder %s29, 0
      %p50 = por %p48, %p49
      %p51 = scmp.ne.s32.totalorder %s37, %s38
      %p52 = scmp.eq.s32.totalorder %s30, 1
      %p53 = por %p51, %p52
      %p55 = scmp.ne.s32.totalorder %s38, %s54
      %p56 = scmp.eq.s32.totalorder %s30, 0
      %p57 = por %p55, %p56
      %s58 = ssub.s32 %s24, %s31
      %p59 = scmp.eq.s32.totalorder %s58, 0
      %s61 = sadd.s32 %s60, 1
      %s62 = scalar_select %p59, %s60, %s61
      %p65 = pneg %p59
      %p66 = scmp.eq.s32.totalorder %s24, 1
      %p67 = por %p65, %p66
      %p68 = scmp.ne.s32.totalorder %s60, %s63
      %p69 = scmp.eq.s32.totalorder %s24, 0
      %p70 = por %p68, %p69
      %p71 = scmp.ne.s32.totalorder %s60, %s63
      %p72 = scmp.eq.s32.totalorder %s29, 1
      %p73 = por %p71, %p72
      %p74 = scmp.ne.s32.totalorder %s63, %s64
      %p75 = scmp.eq.s32.totalorder %s29, 0
      %p76 = por %p74, %p75
      %p77 = scmp.ne.s32.totalorder %s63, %s64
      %p78 = scmp.eq.s32.totalorder %s30, 1
      %p79 = por %p77, %p78
      %p81 = scmp.ne.s32.totalorder %s64, %s80
      %p82 = scmp.eq.s32.totalorder %s30, 0
      %p83 = por %p81, %p82
      %s85 = sadd.s32 %s84, 1
      %p88 = scmp.eq.s32.totalorder %s24, 1
      %p89 = scmp.ne.s32.totalorder %s84, %s86
      %p90 = scmp.eq.s32.totalorder %s24, 0
      %p91 = por %p89, %p90
      %p92 = scmp.ne.s32.totalorder %s84, %s86
      %p93 = scmp.eq.s32.totalorder %s29, 1
      %p94 = por %p92, %p93
      %p95 = scmp.ne.s32.totalorder %s86, %s87
      %p96 = scmp.eq.s32.totalorder %s29, 0
      %p97 = por %p95, %p96
      %p98 = scmp.ne.s32.totalorder %s86, %s87
      %p99 = scmp.eq.s32.totalorder %s30, 1
      %p100 = por %p98, %p99
      %p102 = scmp.ne.s32.totalorder %s87, %s101
      %p103 = scmp.eq.s32.totalorder %s30, 0
      %p104 = por %p102, %p103
      %s106 = sadd.s32 %s105, 1
      %p109 = scmp.eq.s32.totalorder %s24, 1
      %p110 = scmp.ne.s32.totalorder %s105, %s107
      %p111 = scmp.eq.s32.totalorder %s24, 0
      %p112 = por %p110, %p111
      %p113 = scmp.ne.s32.totalorder %s105, %s107
      %p114 = scmp.eq.s32.totalorder %s29, 1
      %p115 = por %p113, %p114
      %p116 = scmp.ne.s32.totalorder %s107, %s108
      %p117 = scmp.eq.s32.totalorder %s29, 0
      %p118 = por %p116, %p117
      %p119 = scmp.ne.s32.totalorder %s107, %s108
      %p120 = scmp.eq.s32.totalorder %s30, 1
      %p121 = por %p119, %p120
      %p123 = scmp.ne.s32.totalorder %s108, %s122
      %p124 = scmp.eq.s32.totalorder %s30, 0
      %p125 = por %p123, %p124
      %s127 = sadd.s32 %s126, 1
      %p130 = scmp.eq.s32.totalorder %s24, 1
      %p131 = scmp.ne.s32.totalorder %s126, %s128
      %p132 = scmp.eq.s32.totalorder %s24, 0
      %p133 = por %p131, %p132
      %p134 = scmp.ne.s32.totalorder %s126, %s128
      %p135 = scmp.eq.s32.totalorder %s29, 1
      %p136 = por %p134, %p135
      %p137 = scmp.ne.s32.totalorder %s128, %s129
      %p138 = scmp.eq.s32.totalorder %s29, 0
      %p139 = por %p137, %p138
      %p140 = scmp.ne.s32.totalorder %s128, %s129
      %p141 = scmp.eq.s32.totalorder %s30, 1
      %p142 = por %p140, %p141
      %p144 = scmp.ne.s32.totalorder %s129, %s143
      %p145 = scmp.eq.s32.totalorder %s30, 0
      %p146 = por %p144, %p145
      %s148 = sadd.s32 %s147, 1
      %p151 = scmp.eq.s32.totalorder %s24, 1
      %p152 = scmp.ne.s32.totalorder %s147, %s149
      %p153 = scmp.eq.s32.totalorder %s24, 0
      %p154 = por %p152, %p153
      %p155 = scmp.ne.s32.totalorder %s147, %s149
      %p156 = scmp.eq.s32.totalorder %s29, 1
      %p157 = por %p155, %p156
      %p158 = scmp.ne.s32.totalorder %s149, %s150
      %p159 = scmp.eq.s32.totalorder %s29, 0
      %p160 = por %p158, %p159
      %p161 = scmp.ne.s32.totalorder %s149, %s150
      %p162 = scmp.eq.s32.totalorder %s30, 1
      %p163 = por %p161, %p162
      %p165 = scmp.ne.s32.totalorder %s150, %s164
      %p166 = scmp.eq.s32.totalorder %s30, 0
      %p167 = por %p165, %p166
      %s169 = sadd.s32 %s168, 1
      %p172 = scmp.eq.s32.totalorder %s24, 1
      %p173 = scmp.ne.s32.totalorder %s168, %s170
      %p174 = scmp.eq.s32.totalorder %s24, 0
      %p175 = por %p173, %p174
      %p176 = scmp.ne.s32.totalorder %s168, %s170
      %p177 = scmp.eq.s32.totalorder %s29, 1
      %p178 = por %p176, %p177
      %p179 = scmp.ne.s32.totalorder %s170, %s171
      %p180 = scmp.eq.s32.totalorder %s29, 0
      %p181 = por %p179, %p180
      %p182 = scmp.ne.s32.totalorder %s170, %s171
      %p183 = scmp.eq.s32.totalorder %s30, 1
      %p184 = por %p182, %p183
      %p186 = scmp.ne.s32.totalorder %s171, %s185
      %p187 = scmp.eq.s32.totalorder %s30, 0
      %p188 = por %p186, %p187
      %s190 = sadd.s32 %s189, 1
      %p193 = scmp.eq.s32.totalorder %s24, 1
      %p194 = scmp.ne.s32.totalorder %s189, %s191
      %p195 = scmp.eq.s32.totalorder %s24, 0
      %p196 = por %p194, %p195
      %p197 = scmp.ne.s32.totalorder %s189, %s191
      %p198 = scmp.eq.s32.totalorder %s29, 1
      %p199 = por %p197, %p198
      %p200 = scmp.ne.s32.totalorder %s191, %s192
      %p201 = scmp.eq.s32.totalorder %s29, 0
      %p202 = por %p200, %p201
      %p203 = scmp.ne.s32.totalorder %s191, %s192
      %p204 = scmp.eq.s32.totalorder %s30, 1
      %p205 = por %p203, %p204
      %p207 = scmp.ne.s32.totalorder %s192, %s206
      %p208 = scmp.eq.s32.totalorder %s30, 0
      %p209 = por %p207, %p208
      %s211 = sadd.s32 %s210, 1
      %p214 = scmp.eq.s32.totalorder %s24, 1
      %p215 = scmp.ne.s32.totalorder %s210, %s212
      %p216 = scmp.eq.s32.totalorder %s24, 0
      %p217 = por %p215, %p216
      %p218 = scmp.ne.s32.totalorder %s210, %s212
      %p219 = scmp.eq.s32.totalorder %s29, 1
      %p220 = por %p218, %p219
      %p221 = scmp.ne.s32.totalorder %s212, %s213
      %p222 = scmp.eq.s32.totalorder %s29, 0
      %p223 = por %p221, %p222
      %p224 = scmp.ne.s32.totalorder %s212, %s213
      %p225 = scmp.eq.s32.totalorder %s30, 1
      %p226 = por %p224, %p225
      %p228 = scmp.ne.s32.totalorder %s213, %s227
      %p229 = scmp.eq.s32.totalorder %s30, 0
      %p230 = por %p228, %p229
      %s232 = sadd.s32 %s231, 1
      %p235 = scmp.eq.s32.totalorder %s24, 1
      %p236 = scmp.ne.s32.totalorder %s231, %s233
      %p237 = scmp.eq.s32.totalorder %s24, 0
      %p238 = por %p236, %p237
      %p239 = scmp.ne.s32.totalorder %s231, %s233
      %p240 = scmp.eq.s32.totalorder %s29, 1
      %p241 = por %p239, %p240
      %p242 = scmp.ne.s32.totalorder %s233, %s234
      %p243 = scmp.eq.s32.totalorder %s29, 0
      %p244 = por %p242, %p243
      %p245 = scmp.ne.s32.totalorder %s233, %s234
      %p246 = scmp.eq.s32.totalorder %s30, 1
      %p247 = por %p245, %p246
      %p249 = scmp.ne.s32.totalorder %s234, %s248
      %p250 = scmp.eq.s32.totalorder %s30, 0
      %p251 = por %p249, %p250
      %s253 = sadd.s32 %s252, 1
      %p256 = scmp.eq.s32.totalorder %s24, 1
      %p257 = scmp.ne.s32.totalorder %s252, %s254
      %p258 = scmp.eq.s32.totalorder %s24, 0
      %p259 = por %p257, %p258
      %p260 = scmp.ne.s32.totalorder %s252, %s254
      %p261 = scmp.eq.s32.totalorder %s29, 1
      %p262 = por %p260, %p261
      %p263 = scmp.ne.s32.totalorder %s254, %s255
      %p264 = scmp.eq.s32.totalorder %s29, 0
      %p265 = por %p263, %p264
      %p266 = scmp.ne.s32.totalorder %s254, %s255
      %p267 = scmp.eq.s32.totalorder %s30, 1
      %p268 = por %p266, %p267
      %p270 = scmp.ne.s32.totalorder %s255, %s269
      %p271 = scmp.eq.s32.totalorder %s30, 0
      %p272 = por %p270, %p271
      %s274 = sadd.s32 %s273, 1
      %p277 = scmp.eq.s32.totalorder %s24, 1
      %p278 = scmp.ne.s32.totalorder %s273, %s275
      %p279 = scmp.eq.s32.totalorder %s24, 0
      %p280 = por %p278, %p279
      %p281 = scmp.ne.s32.totalorder %s273, %s275
      %p282 = scmp.eq.s32.totalorder %s29, 1
      %p283 = por %p281, %p282
      %p284 = scmp.ne.s32.totalorder %s275, %s276
      %p285 = scmp.eq.s32.totalorder %s29, 0
      %p286 = por %p284, %p285
      %p287 = scmp.ne.s32.totalorder %s275, %s276
      %p288 = scmp.eq.s32.totalorder %s30, 1
      %p289 = por %p287, %p288
      %p291 = scmp.ne.s32.totalorder %s276, %s290
      %p292 = scmp.eq.s32.totalorder %s30, 0
      %p293 = por %p291, %p292
      %s295 = sadd.s32 %s294, 1
      %p298 = scmp.eq.s32.totalorder %s24, 1
      %p299 = scmp.ne.s32.totalorder %s294, %s296
      %p300 = scmp.eq.s32.totalorder %s24, 0
      %p301 = por %p299, %p300
      %p302 = scmp.ne.s32.totalorder %s294, %s296
      %p303 = scmp.eq.s32.totalorder %s29, 1
      %p304 = por %p302, %p303
      %p305 = scmp.ne.s32.totalorder %s296, %s297
      %p306 = scmp.eq.s32.totalorder %s29, 0
      %p307 = por %p305, %p306
      %p308 = scmp.ne.s32.totalorder %s296, %s297
      %p309 = scmp.eq.s32.totalorder %s30, 1
      %p310 = por %p308, %p309
      %p312 = scmp.ne.s32.totalorder %s297, %s311
      %p313 = scmp.eq.s32.totalorder %s30, 0
      %p314 = por %p312, %p313
      %s316 = sadd.s32 %s315, 1
      %p319 = scmp.eq.s32.totalorder %s24, 1
      %p320 = scmp.ne.s32.totalorder %s315, %s317
      %p321 = scmp.eq.s32.totalorder %s24, 0
      %p322 = por %p320, %p321
      %p323 = scmp.ne.s32.totalorder %s315, %s317
      %p324 = scmp.eq.s32.totalorder %s29, 1
      %p325 = por %p323, %p324
      %p326 = scmp.ne.s32.totalorder %s317, %s318
      %p327 = scmp.eq.s32.totalorder %s29, 0
      %p328 = por %p326, %p327
      %p329 = scmp.ne.s32.totalorder %s317, %s318
      %p330 = scmp.eq.s32.totalorder %s30, 1
      %p331 = por %p329, %p330
      %p333 = scmp.ne.s32.totalorder %s318, %s332
      %p334 = scmp.eq.s32.totalorder %s30, 0
      %p335 = por %p333, %p334
      %s336 = ssub.s32 %s24, %s31
      %p337 = scmp.eq.s32.totalorder %s336, 0
      %s339 = sadd.s32 %s338, 1
      %s340 = scalar_select %p337, %s338, %s339
      %p343 = pneg %p337
      %p344 = scmp.eq.s32.totalorder %s24, 1
      %p345 = por %p343, %p344
      %p346 = scmp.ne.s32.totalorder %s338, %s341
      %p347 = scmp.eq.s32.totalorder %s24, 0
      %p348 = por %p346, %p347
      %p349 = scmp.ne.s32.totalorder %s338, %s341
      %p350 = scmp.eq.s32.totalorder %s29, 1
      %p351 = por %p349, %p350
      %p352 = scmp.ne.s32.totalorder %s341, %s342
      %p353 = scmp.eq.s32.totalorder %s29, 0
      %p354 = por %p352, %p353
      %p355 = scmp.ne.s32.totalorder %s341, %s342
      %p356 = scmp.eq.s32.totalorder %s30, 1
      %p357 = por %p355, %p356
      %p359 = scmp.ne.s32.totalorder %s342, %s358
      %p360 = scmp.eq.s32.totalorder %s30, 0
      %p361 = por %p359, %p360
      %p362 = scmp.le.s32.totalorder 1, %s24
      %p363 = scmp.lt.s32.totalorder %s24, 3
      %p364 = pnand %p362, %p363
      %p365 = pneg %p364
      // Predicated region
      $region9: #{tpu_custom_call.1} parent=5 // pred_check
        _
      $region10: #{tpu_custom_call.1} parent=5 // pred_check_branch
        %367 = sbr.rel (%p364) target = $region12
      $region11: #{tpu_custom_call.1} parent=5 // pred_region
        %s368 = ssub.s32 %s24, 1
        // Predicated region
        $region13: #{tpu_custom_call.1} parent=11 // pred_check
          %p369 = pneg %p97
        $region14: #{tpu_custom_call.1} parent=11 // pred_check_branch
          %371 = sbr.rel (%p369) target = $region16
        $region15: #{tpu_custom_call.1} parent=11 // pred_region
          _
        $region16: #{tpu_custom_call.1} parent=11 // pred_fallthru
          _
        // Predicated region
        $region17: #{tpu_custom_call.1} parent=11 // pred_check
          %p372 = pneg %p118
        $region18: #{tpu_custom_call.1} parent=11 // pred_check_branch
          %374 = sbr.rel (%p372) target = $region20
        $region19: #{tpu_custom_call.1} parent=11 // pred_region
          _
        $region20: #{tpu_custom_call.1} parent=11 // pred_fallthru
          _
        // Predicated region
        $region21: #{tpu_custom_call.1} parent=11 // pred_check
          %p375 = pneg %p139
        $region22: #{tpu_custom_call.1} parent=11 // pred_check_branch
          %377 = sbr.rel (%p375) target = $region24
        $region23: #{tpu_custom_call.1} parent=11 // pred_region
          _
        $region24: #{tpu_custom_call.1} parent=11 // pred_fallthru
          _
        // Predicated region
        $region25: #{tpu_custom_call.1} parent=11 // pred_check
          %p378 = pneg %p160
        $region26: #{tpu_custom_call.1} parent=11 // pred_check_branch
          %380 = sbr.rel (%p378) target = $region28
        $region27: #{tpu_custom_call.1} parent=11 // pred_region
          _
        $region28: #{tpu_custom_call.1} parent=11 // pred_fallthru
          _
        // Predicated region
        $region29: #{tpu_custom_call.1} parent=11 // pred_check
          %p381 = pneg %p181
        $region30: #{tpu_custom_call.1} parent=11 // pred_check_branch
          %383 = sbr.rel (%p381) target = $region32
        $region31: #{tpu_custom_call.1} parent=11 // pred_region
          %s385 = ssub.s32 32768, 32768
          %386 = vsyncadd [#allocation3], %s385
          %s387 = sshll.u32 [#allocation2], 4
          %s388 = int_to_ptr.vmem [resolvable:$true] %s387
          %393 = dma.hbm_to_vmem [thread:$0]  %s6, 32768, %s388, [#allocation3], 256, 256, 16
        $region32: #{tpu_custom_call.1} parent=11 // pred_fallthru
          _
        // Predicated region
        $region33: #{tpu_custom_call.1} parent=11 // pred_check
          %p394 = pneg %p202
        $region34: #{tpu_custom_call.1} parent=11 // pred_check_branch
          %396 = sbr.rel (%p394) target = $region36
        $region35: #{tpu_custom_call.1} parent=11 // pred_region
          _
        $region36: #{tpu_custom_call.1} parent=11 // pred_fallthru
          _
        // Predicated region
        $region37: #{tpu_custom_call.1} parent=11 // pred_check
          %p397 = pneg %p223
        $region38: #{tpu_custom_call.1} parent=11 // pred_check_branch
          %399 = sbr.rel (%p397) target = $region40
        $region39: #{tpu_custom_call.1} parent=11 // pred_region
          _
        $region40: #{tpu_custom_call.1} parent=11 // pred_fallthru
          _
        // Predicated region
        $region41: #{tpu_custom_call.1} parent=11 // pred_check
          %p400 = pneg %p244
        $region42: #{tpu_custom_call.1} parent=11 // pred_check_branch
          %402 = sbr.rel (%p400) target = $region44
        $region43: #{tpu_custom_call.1} parent=11 // pred_region
          _
        $region44: #{tpu_custom_call.1} parent=11 // pred_fallthru
          _
        // Predicated region
        $region45: #{tpu_custom_call.1} parent=11 // pred_check
          %p403 = pneg %p265
        $region46: #{tpu_custom_call.1} parent=11 // pred_check_branch
          %405 = sbr.rel (%p403) target = $region48
        $region47: #{tpu_custom_call.1} parent=11 // pred_region
          _
        $region48: #{tpu_custom_call.1} parent=11 // pred_fallthru
          _
        // Predicated region
        $region49: #{tpu_custom_call.1} parent=11 // pred_check
          %p406 = pneg %p286
        $region50: #{tpu_custom_call.1} parent=11 // pred_check_branch
          %408 = sbr.rel (%p406) target = $region52
        $region51: #{tpu_custom_call.1} parent=11 // pred_region
          _
        $region52: #{tpu_custom_call.1} parent=11 // pred_fallthru
          _
        // Predicated region
        $region53: #{tpu_custom_call.1} parent=11 // pred_check
          %p409 = pneg %p307
        $region54: #{tpu_custom_call.1} parent=11 // pred_check_branch
          %411 = sbr.rel (%p409) target = $region56
        $region55: #{tpu_custom_call.1} parent=11 // pred_region
          _
        $region56: #{tpu_custom_call.1} parent=11 // pred_fallthru
          _
        // Predicated region
        $region57: #{tpu_custom_call.1} parent=11 // pred_check
          %p412 = pneg %p328
        $region58: #{tpu_custom_call.1} parent=11 // pred_check_branch
          %414 = sbr.rel (%p412) target = $region60
        $region59: #{tpu_custom_call.1} parent=11 // pred_region
          _
        $region60: #{tpu_custom_call.1} parent=11 // pred_fallthru
          _
      $region12: #{tpu_custom_call.1} parent=5 // pred_fallthru
        _
      %p415 = scmp.lt.s32.totalorder %s24, 2
      // Predicated region
      $region61: #{tpu_custom_call.1} parent=5 // pred_check
        %p416 = pneg %p415
      $region62: #{tpu_custom_call.1} parent=5 // pred_check_branch
        %418 = sbr.rel (%p416) target = $region64
      $region63: #{tpu_custom_call.1} parent=5 // pred_region
        // Predicated region
        $region65: #{tpu_custom_call.1} parent=63 // pred_check
          %p419 = pneg %p44
        $region66: #{tpu_custom_call.1} parent=63 // pred_check_branch
          %421 = sbr.rel (%p419) target = $region68
        $region67: #{tpu_custom_call.1} parent=63 // pred_region
          %p422 = scmp.lt.s32.totalorder %s24, 1
          %s423 = scalar_select %p422, %s24, 1
          %s424 = smul.addr %s423, 4
          %s425 = smul.addr %s424, 8
          %s426 = scalar_lea.vmem %s0, %s425
        $region68: #{tpu_custom_call.1} parent=63 // pred_fallthru
          _
        // Predicated region
        $region69: #{tpu_custom_call.1} parent=63 // pred_check
          %p427 = pneg %p70
        $region70: #{tpu_custom_call.1} parent=63 // pred_check_branch
          %429 = sbr.rel (%p427) target = $region72
        $region71: #{tpu_custom_call.1} parent=63 // pred_region
          %p430 = scmp.lt.s32.totalorder %s24, 1
          %s431 = scalar_select %p430, %s24, 1
          %s432 = smul.addr %s431, 4
          %s433 = smul.addr %s432, 8
          %s434 = scalar_lea.vmem %s1, %s433
        $region72: #{tpu_custom_call.1} parent=63 // pred_fallthru
          _
      $region64: #{tpu_custom_call.1} parent=5 // pred_fallthru
        _
      %p435 = scmp.le.s32.totalorder 1, %s24
      %p436 = scmp.lt.s32.totalorder %s24, 3
      %p437 = pnand %p435, %p436
      %p438 = pneg %p437
      // Predicated region
      $region73: #{tpu_custom_call.1} parent=5 // pred_check
        _
      $region74: #{tpu_custom_call.1} parent=5 // pred_check_branch
        %440 = sbr.rel (%p437) target = $region76
      $region75: #{tpu_custom_call.1} parent=5 // pred_region
        %s441 = ssub.s32 %s24, 1
        // Predicated region
        $region77: #{tpu_custom_call.1} parent=75 // pred_check
          %p442 = pneg %p181
        $region78: #{tpu_custom_call.1} parent=75 // pred_check_branch
          %444 = sbr.rel (%p442) target = $region80
        $region79: #{tpu_custom_call.1} parent=75 // pred_region
          %445 = dma.done [#allocation3], 32768
        $region80: #{tpu_custom_call.1} parent=75 // pred_fallthru
          _
        %p446 = scmp.lt.s32.totalorder %s29, 1
        %s447 = scalar_select %p446, %s29, 1
        %s448 = smul.addr %s447, 4
        %s449 = smul.addr %s448, 8
        %s450 = scalar_lea.vmem %s0, %s449
        %p451 = pneg %p50
        %p452 = pneg %p47
        %p453 = scmp.lt.s32.totalorder %s29, 1
        %s454 = scalar_select %p453, %s29, 1
        %s455 = smul.addr %s454, 4
        %s456 = smul.addr %s455, 8
        %s457 = scalar_lea.vmem %s1, %s456
        %p458 = pneg %p76
        %p459 = pneg %p73
        %p460 = pneg %p97
        %p461 = pneg %p94
        %p462 = pneg %p118
        %p463 = pneg %p115
        %p464 = pneg %p139
        %p465 = pneg %p136
        %p466 = pneg %p160
        %p467 = pneg %p157
        %p468 = pneg %p181
        %p469 = pneg %p178
        %p470 = pneg %p202
        %p471 = pneg %p199
        %p472 = pneg %p223
        %p473 = pneg %p220
        %p474 = pneg %p244
        %p475 = pneg %p241
        %p476 = pneg %p265
        %p477 = pneg %p262
        %p478 = pneg %p286
        %p479 = pneg %p283
        %p480 = pneg %p307
        %p481 = pneg %p304
        %p482 = pneg %p328
        %p483 = pneg %p325
        %p484 = pneg %p354
        %p485 = pneg %p351
        %s486 = sand.u32 %s341, 1
        %s487 = scalar_lea.sflag [#allocation4], %s486
        %s488 = sand.u32 %s341, 1
        %s489 = smul.addr %s488, 64
        %s490 = scalar_lea.vmem [#allocation5], %s489
        %p491 = scmp.lt.s32.totalorder %s29, 1
        %s492 = scalar_select %p491, %s29, 1
        %s493 = smul.addr %s492, 4
        %s494 = smul.addr %s493, 8
        %s495 = scalar_lea.vmem %s0, %s494
        %p496 = scmp.lt.s32.totalorder %s29, 1
        %s497 = scalar_select %p496, %s29, 1
        %s498 = smul.addr %s497, 4
        %s499 = smul.addr %s498, 8
        %s500 = scalar_lea.vmem %s1, %s499
        %v501 = vld [vmem:[%s495] sm:$0xff]
        %v502 = vld [vmem:[%s495 + $0x8] sm:$0xff]
        %v503 = vld [vmem:[%s495 + $0x10] sm:$0xff]
        %v504 = vld [vmem:[%s495 + $0x18] sm:$0xff]
        %v505 = vld [vmem:[%s500] sm:$0xff]
        %v506 = vld [vmem:[%s500 + $0x8] sm:$0xff]
        %v507 = vld [vmem:[%s500 + $0x10] sm:$0xff]
        %v508 = vld [vmem:[%s500 + $0x18] sm:$0xff]
        %v509 = vld [vmem:[%s8] sm:$0xff]
        %v510 = vld [vmem:[%s8 + $0x8] sm:$0xff]
        %v511 = vld [vmem:[%s8 + $0x10] sm:$0xff]
        %v512 = vld [vmem:[%s8 + $0x18] sm:$0xff]
        %v513 = vld [vmem:[%s9] sm:$0xff]
        %v514 = vld [vmem:[%s9 + $0x8] sm:$0xff]
        %v515 = vld [vmem:[%s9 + $0x10] sm:$0xff]
        %v516 = vld [vmem:[%s9 + $0x18] sm:$0xff]
        %vm517 = vcmask 130048
        %v519 = vsel %vm517, %v513, 0
        %v522 = vsel %vm517, %v514, 0
        %v525 = vsel %vm517, %v515, 0
        %v528 = vsel %vm517, %v516, 0
        %530 = vmatprep.subr.mxu0 0.0
        %531 = vmatpush1.msra.mxu0 0.0
        %532 = vmatprep.subr.mxu0 0.0
        %533 = vmatpush1.msra.mxu0 0.0
        %534 = vmatprep.subr.mxu0 0.0
        %535 = vmatpush1.msra.mxu0 0.0
        %536 = vmatprep.subr.mxu0 0.0
        %537 = vmatpush1.msra.mxu0 0.0
        %538 = vmatprep.subr.mxu0 0.0
        %539 = vmatpush1.msra.mxu0 0.0
        %540 = vmatprep.subr.mxu0 0.0
        %541 = vmatpush1.msra.mxu0 0.0
        %542 = vmatprep.subr.mxu0 0.0
        %543 = vmatpush1.msra.mxu0 0.0
        %544 = vmatprep.subr.mxu0 0.0
        %545 = vmatpush1.msra.mxu0 0.0
        %546 = vmatprep.subr.mxu0 0.0
        %547 = vmatpush1.msra.mxu0 0.0
        %548 = vmatprep.subr.mxu0 0.0
        %549 = vmatpush1.msra.mxu0 0.0
        %550 = vmatprep.subr.mxu0 0.0
        %551 = vmatpush1.msra.mxu0 0.0
        %552 = vmatprep.subr.mxu0 0.0
        %553 = vmatpush1.msra.mxu0 0.0
        %554 = vmatprep.subr.mxu0 0.0
        %555 = vmatpush1.msra.mxu0 0.0
        %556 = vmatprep.subr.mxu0 0.0
        %557 = vmatpush1.msra.mxu0 0.0
        %558 = vmatprep.subr.mxu0 %v508
        %559 = vmatpush1.msra.mxu0 %v507
        %560 = vmatprep.subr.mxu0 %v506
        %561 = vmatpush1.msra.mxu0 %v505
        %562 = vmatprep.subr.mxu0 0.0
        %563 = vmatpush2.msra.mxu0 0.0
        %564 = vmatprep.subr.mxu0 0.0
        %565 = vmatpush2.msra.mxu0 0.0
        %566 = vmatprep.subr.mxu0 0.0
        %567 = vmatpush2.msra.mxu0 0.0
        %568 = vmatprep.subr.mxu0 0.0
        %569 = vmatpush2.msra.mxu0 0.0
        %570 = vmatprep.subr.mxu0 0.0
        %571 = vmatpush2.msra.mxu0 0.0
        %572 = vmatprep.subr.mxu0 0.0
        %573 = vmatpush2.msra.mxu0 0.0
        %574 = vmatprep.subr.mxu0 0.0
        %575 = vmatpush2.msra.mxu0 0.0
        %576 = vmatprep.subr.mxu0 0.0
        %577 = vmatpush2.msra.mxu0 0.0
        %578 = vmatprep.subr.mxu0 0.0
        %579 = vmatpush2.msra.mxu0 0.0
        %580 = vmatprep.subr.mxu0 0.0
        %581 = vmatpush2.msra.mxu0 0.0
        %582 = vmatprep.subr.mxu0 0.0
        %583 = vmatpush2.msra.mxu0 0.0
        %584 = vmatprep.subr.mxu0 0.0
        %585 = vmatpush2.msra.mxu0 0.0
        %586 = vmatprep.subr.mxu0 0.0
        %587 = vmatpush2.msra.mxu0 0.0
        %588 = vmatprep.subr.mxu0 0.0
        %589 = vmatpush2.msra.mxu0 0.0
        %590 = vmatprep.subr.mxu0 0.0
        %591 = vmatpush2.msra.mxu0 0.0
        %592 = vmatprep.subr.mxu0 0.0
        %593 = vmatpush2.msra.mxu0 0.0
        %594 = vmatprep.mubr.f32.mxu0 0.0
        %595 = vmatmul.mubr.f32.gmra.mxu0 %v519
        %v596 = vpop.f32.mrf.mxu0
        %v597 = vadd.f32 0.0, %v596
        %v598 = vpop.f32.mrf.mxu0
        %v599 = vadd.f32 0.0, %v598
        %600 = vmatprep.mubr.f32.mxu0 0.0
        %601 = vmatmul.mubr.f32.gmra.mxu0 %v522
        %v602 = vpop.f32.mrf.mxu0
        %v603 = vadd.f32 0.0, %v602
        %v604 = vpop.f32.mrf.mxu0
        %v605 = vadd.f32 0.0, %v604
        %606 = vmatprep.mubr.f32.mxu0 0.0
        %607 = vmatmul.mubr.f32.gmra.mxu0 %v525
        %v608 = vpop.f32.mrf.mxu0
        %v609 = vadd.f32 0.0, %v608
        %v610 = vpop.f32.mrf.mxu0
        %v611 = vadd.f32 0.0, %v610
        %612 = vmatprep.mubr.f32.mxu0 0.0
        %613 = vmatmul.mubr.f32.gmra.mxu0 %v528
        %v614 = vpop.f32.mrf.mxu0
        %v615 = vadd.f32 0.0, %v614
        %v616 = vpop.f32.mrf.mxu0
        %v617 = vadd.f32 0.0, %v616
        %618 = vdwg.mxu0
        %v620 = vsel %vm517, %v509, 0
        %v623 = vsel %vm517, %v510, 0
        %v626 = vsel %vm517, %v511, 0
        %v629 = vsel %vm517, %v512, 0
        %631 = vmatprep.subr.mxu0 0.0
        %632 = vmatpush1.msra.mxu0 0.0
        %633 = vmatprep.subr.mxu0 0.0
        %634 = vmatpush1.msra.mxu0 0.0
        %635 = vmatprep.subr.mxu0 0.0
        %636 = vmatpush1.msra.mxu0 0.0
        %637 = vmatprep.subr.mxu0 0.0
        %638 = vmatpush1.msra.mxu0 0.0
        %639 = vmatprep.subr.mxu0 0.0
        %640 = vmatpush1.msra.mxu0 0.0
        %641 = vmatprep.subr.mxu0 0.0
        %642 = vmatpush1.msra.mxu0 0.0
        %643 = vmatprep.subr.mxu0 0.0
        %644 = vmatpush1.msra.mxu0 0.0
        %645 = vmatprep.subr.mxu0 0.0
        %646 = vmatpush1.msra.mxu0 0.0
        %647 = vmatprep.subr.mxu0 0.0
        %648 = vmatpush1.msra.mxu0 0.0
        %649 = vmatprep.subr.mxu0 0.0
        %650 = vmatpush1.msra.mxu0 0.0
        %651 = vmatprep.subr.mxu0 0.0
        %652 = vmatpush1.msra.mxu0 0.0
        %653 = vmatprep.subr.mxu0 0.0
        %654 = vmatpush1.msra.mxu0 0.0
        %655 = vmatprep.subr.mxu0 0.0
        %656 = vmatpush1.msra.mxu0 0.0
        %657 = vmatprep.subr.mxu0 0.0
        %658 = vmatpush1.msra.mxu0 0.0
        %659 = vmatprep.subr.mxu0 %v504
        %660 = vmatpush1.msra.mxu0 %v503
        %661 = vmatprep.subr.mxu0 %v502
        %662 = vmatpush1.msra.mxu0 %v501
        %663 = vmatprep.subr.mxu0 0.0
        %664 = vmatpush2.msra.mxu0 0.0
        %665 = vmatprep.subr.mxu0 0.0
        %666 = vmatpush2.msra.mxu0 0.0
        %667 = vmatprep.subr.mxu0 0.0
        %668 = vmatpush2.msra.mxu0 0.0
        %669 = vmatprep.subr.mxu0 0.0
        %670 = vmatpush2.msra.mxu0 0.0
        %671 = vmatprep.subr.mxu0 0.0
        %672 = vmatpush2.msra.mxu0 0.0
        %673 = vmatprep.subr.mxu0 0.0
        %674 = vmatpush2.msra.mxu0 0.0
        %675 = vmatprep.subr.mxu0 0.0
        %676 = vmatpush2.msra.mxu0 0.0
        %677 = vmatprep.subr.mxu0 0.0
        %678 = vmatpush2.msra.mxu0 0.0
        %679 = vmatprep.subr.mxu0 0.0
        %680 = vmatpush2.msra.mxu0 0.0
        %681 = vmatprep.subr.mxu0 0.0
        %682 = vmatpush2.msra.mxu0 0.0
        %683 = vmatprep.subr.mxu0 0.0
        %684 = vmatpush2.msra.mxu0 0.0
        %685 = vmatprep.subr.mxu0 0.0
        %686 = vmatpush2.msra.mxu0 0.0
        %687 = vmatprep.subr.mxu0 0.0
        %688 = vmatpush2.msra.mxu0 0.0
        %689 = vmatprep.subr.mxu0 0.0
        %690 = vmatpush2.msra.mxu0 0.0
        %691 = vmatprep.subr.mxu0 0.0
        %692 = vmatpush2.msra.mxu0 0.0
        %693 = vmatprep.subr.mxu0 0.0
        %694 = vmatpush2.msra.mxu0 0.0
        %695 = vmatprep.mubr.f32.mxu0 0.0
        %696 = vmatmul.mubr.f32.gmra.mxu0 %v620
        %v697 = vpop.f32.mrf.mxu0
        %v698 = vadd.f32 %v597, %v697
        %v699 = vpop.f32.mrf.mxu0
        %v700 = vadd.f32 %v599, %v699
        %701 = vmatprep.mubr.f32.mxu0 0.0
        %702 = vmatmul.mubr.f32.gmra.mxu0 %v623
        %v703 = vpop.f32.mrf.mxu0
        %v704 = vadd.f32 %v603, %v703
        %v705 = vpop.f32.mrf.mxu0
        %v706 = vadd.f32 %v605, %v705
        %707 = vmatprep.mubr.f32.mxu0 0.0
        %708 = vmatmul.mubr.f32.gmra.mxu0 %v626
        %v709 = vpop.f32.mrf.mxu0
        %v710 = vadd.f32 %v609, %v709
        %v711 = vpop.f32.mrf.mxu0
        %v712 = vadd.f32 %v611, %v711
        %713 = vmatprep.mubr.f32.mxu0 0.0
        %714 = vmatmul.mubr.f32.gmra.mxu0 %v629
        %v715 = vpop.f32.mrf.mxu0
        %v716 = vadd.f32 %v615, %v715
        %v717 = vpop.f32.mrf.mxu0
        %v718 = vadd.f32 %v617, %v717
        %719 = vdwg.mxu0
        %v720 = vld [vmem:[%s10] sm:$0xff]
        %v721 = vld [vmem:[%s10 + $0x8] sm:$0xff]
        %v722 = vld [vmem:[%s10 + $0x10] sm:$0xff]
        %v723 = vld [vmem:[%s10 + $0x18] sm:$0xff]
        %725 = vset.pattern.permute.xlu0 0
        %726 = vperm.xlu0 %725, %v720
        %v727 = vpop.permute.xlu0 %726
        %730 = vset.pattern.permute.xlu0 0
        %731 = vperm.xlu0 %730, %v721
        %v732 = vpop.permute.xlu0 %731
        %735 = vset.pattern.permute.xlu0 0
        %736 = vperm.xlu0 %735, %v722
        %v737 = vpop.permute.xlu0 %736
        %740 = vset.pattern.permute.xlu0 0
        %741 = vperm.xlu0 %740, %v723
        %v742 = vpop.permute.xlu0 %741
        %v744 = vadd.f32 %v698, %v727
        %v745 = vadd.f32 %v700, %v727
        %v746 = vadd.f32 %v704, %v732
        %v747 = vadd.f32 %v706, %v732
        %v748 = vadd.f32 %v710, %v737
        %v749 = vadd.f32 %v712, %v737
        %v750 = vadd.f32 %v716, %v742
        %v751 = vadd.f32 %v718, %v742
        %v752 = vmax.f32 %v744, 0.0
        %v753 = vmax.f32 %v745, 0.0
        %v754 = vmax.f32 %v746, 0.0
        %v755 = vmax.f32 %v747, 0.0
        %v756 = vmax.f32 %v748, 0.0
        %v757 = vmax.f32 %v749, 0.0
        %v758 = vmax.f32 %v750, 0.0
        %v759 = vmax.f32 %v751, 0.0
        %v760 = vadd.f32 %v501, %v502
        %761 = vadd.xlane.f32.xlu0 %v760
        %v762 = vpop.xlane.xlu0 %761
        %v763 = vadd.f32 %v503, %v504
        %764 = vadd.xlane.f32.xlu0 %v763
        %v765 = vpop.xlane.xlu0 %764
        %v766 = vrcp.pop 256.0
        %v767 = vmul.f32 %v762, %v766
        %v768 = vmul.f32 %v765, %v766
        %v769 = vmax.f32 %v501, %v502
        %770 = vmax.xlane.f32.xlu0 %v769
        %v771 = vpop.xlane.xlu0 %770
        %v772 = vmax.f32 %v503, %v504
        %773 = vmax.xlane.f32.xlu0 %v772
        %v774 = vpop.xlane.xlu0 %773
        %v775 = vld [vmem:[%s2] sm:$0xff]
        %v776 = vld [vmem:[%s2 + $0x8] sm:$0xff]
        %v777 = vld [vmem:[%s3] sm:$0x1]
        %v778 = vld [vmem:[%s4] sm:$0xff]
        %v779 = vld [vmem:[%s4 + $0x8] sm:$0xff]
        %v780 = vld [vmem:[%s5] sm:$0xff]
        %v781 = vld [vmem:[%s5 + $0x8] sm:$0xff]
        %v782 = vmul.f32 %v775, %v767
        %v783 = vmul.f32 %v776, %v768
        %vm784 = vcmask 15360
        %v785 = vsel %vm784, %v782, 0.0
        %v786 = vsel %vm784, %v783, 0.0
        %v787 = vadd.f32 %v785, %v786
        %v788 = vrot.slane %v787, 4
        %v789 = vadd.f32 %v787, %v788
        %v790 = vrot.slane %v789, 2
        %v791 = vadd.f32 %v789, %v790
        %v792 = vrot.slane %v791, 1
        %v793 = vadd.f32 %v791, %v792
        %v794 = vadd.f32 %v793, %v777
        %v795 = vmax.f32 %v794, 0.0
        %v796 = vlaneseq
        %v797 = vshrl.u32 %v796, 7
        %v798 = vsub.s32 0, %v797
        %v799 = vrot.slane %v795, %v798
        %v800 = vmul.f32 %v778, %v799
        %v801 = vmul.f32 %v779, %v799
        %v802 = vsel %vm784, %v800, 0.0
        %803 = vadd.xlane.f32.xlu0 %v802
        %v804 = vpop.xlane.xlu0 %803
        %v805 = vsel %vm784, %v801, 0.0
        %806 = vadd.xlane.f32.xlu0 %v805
        %v807 = vpop.xlane.xlu0 %806
        %v808 = vadd.f32 %v804, %v780
        %v809 = vadd.f32 %v807, %v781
        %v810 = vmul.f32 %v775, %v771
        %v811 = vmul.f32 %v776, %v774
        %v812 = vsel %vm784, %v810, 0.0
        %v813 = vsel %vm784, %v811, 0.0
        %v814 = vadd.f32 %v812, %v813
        %v815 = vrot.slane %v814, 4
        %v816 = vadd.f32 %v814, %v815
        %v817 = vrot.slane %v816, 2
        %v818 = vadd.f32 %v816, %v817
        %v819 = vrot.slane %v818, 1
        %v820 = vadd.f32 %v818, %v819
        %v821 = vadd.f32 %v820, %v777
        %v822 = vmax.f32 %v821, 0.0
        %v823 = vlaneseq
        %v824 = vshrl.u32 %v823, 7
        %v825 = vsub.s32 0, %v824
        %v826 = vrot.slane %v822, %v825
        %v827 = vmul.f32 %v778, %v826
        %v828 = vmul.f32 %v779, %v826
        %v829 = vsel %vm784, %v827, 0.0
        %830 = vadd.xlane.f32.xlu0 %v829
        %v831 = vpop.xlane.xlu0 %830
        %v832 = vsel %vm784, %v828, 0.0
        %833 = vadd.xlane.f32.xlu0 %v832
        %v834 = vpop.xlane.xlu0 %833
        %v835 = vadd.f32 %v831, %v780
        %v836 = vadd.f32 %v834, %v781
        %v837 = vadd.f32 %v808, %v835
        %v838 = vadd.f32 %v809, %v836
        %v839 = vxor.u32 %v837, 2147483648
        %v840 = vxor.u32 %v838, 2147483648
        %v841 = vmul.f32 %v839, 1.442695
        %v842 = vpow.pop %v841
        %v843 = vmul.f32 %v840, 1.442695
        %v844 = vpow.pop %v843
        %v845 = vadd.f32 %v842, 1.0
        %v846 = vadd.f32 %v844, 1.0
        %v847 = vrcp.pop %v845
        %v848 = vmul.f32 1.0, %v847
        %v849 = vrcp.pop %v846
        %v850 = vmul.f32 1.0, %v849
        %852 = vset.pattern.permute.xlu0 0
        %853 = vperm.xlu0 %852, %v848
        %v854 = vpop.permute.xlu0 %853
        %857 = vset.pattern.permute.xlu0 0
        %858 = vperm.xlu0 %857, %v850
        %v859 = vpop.permute.xlu0 %858
        %v861 = vmul.f32 %v501, %v854
        %v862 = vmul.f32 %v502, %v854
        %v863 = vmul.f32 %v503, %v859
        %v864 = vmul.f32 %v504, %v859
        %v865 = vadd.f32 %v861, %v863
        %v866 = vrot.slane %v865, 4
        %v867 = vadd.f32 %v865, %v866
        %v868 = vrot.slane %v867, 2
        %v869 = vadd.f32 %v867, %v868
        %v870 = vrot.slane %v869, 1
        %v871 = vadd.f32 %v869, %v870
        %v872 = vadd.f32 %v862, %v864
        %v873 = vrot.slane %v872, 4
        %v874 = vadd.f32 %v872, %v873
        %v875 = vrot.slane %v874, 2
        %v876 = vadd.f32 %v874, %v875
        %v877 = vrot.slane %v876, 1
        %v878 = vadd.f32 %v876, %v877
        %v879 = vrcp.pop 16.0
        %v880 = vmul.f32 %v871, %v879
        %v881 = vmul.f32 %v878, %v879
        %v882 = vmax.f32 %v861, %v863
        %v883 = vrot.slane %v882, 4
        %v884 = vmax.f32 %v882, %v883
        %v885 = vrot.slane %v884, 2
        %v886 = vmax.f32 %v884, %v885
        %v887 = vrot.slane %v886, 1
        %v888 = vmax.f32 %v886, %v887
        %v889 = vmax.f32 %v862, %v864
        %v890 = vrot.slane %v889, 4
        %v891 = vmax.f32 %v889, %v890
        %v892 = vrot.slane %v891, 2
        %v893 = vmax.f32 %v891, %v892
        %v894 = vrot.slane %v893, 1
        %v895 = vmax.f32 %v893, %v894
        %v896 = vld [vmem:[#allocation2] sm:$0xff]
        %v897 = vld [vmem:[#allocation2 + $0x8] sm:$0xff]
        %v898 = vld [vmem:[#allocation2 + $0x10] sm:$0xff]
        %v899 = vld [vmem:[#allocation2 + $0x18] sm:$0xff]
        %v900 = vld [vmem:[#allocation2 + $0x20] sm:$0xff]
        %v901 = vld [vmem:[#allocation2 + $0x28] sm:$0xff]
        %v902 = vld [vmem:[#allocation2 + $0x30] sm:$0xff]
        %v903 = vld [vmem:[#allocation2 + $0x38] sm:$0xff]
        %v904 = vld [vmem:[#allocation2 + $0x40] sm:$0xff]
        %v905 = vld [vmem:[#allocation2 + $0x48] sm:$0xff]
        %v906 = vld [vmem:[#allocation2 + $0x50] sm:$0xff]
        %v907 = vld [vmem:[#allocation2 + $0x58] sm:$0xff]
        %v908 = vld [vmem:[#allocation2 + $0x60] sm:$0xff]
        %v909 = vld [vmem:[#allocation2 + $0x68] sm:$0xff]
        %v910 = vld [vmem:[#allocation2 + $0x70] sm:$0xff]
        %v911 = vld [vmem:[#allocation2 + $0x78] sm:$0xff]
        %v912 = vld [vmem:[#allocation2 + $0x80] sm:$0xff]
        %v913 = vld [vmem:[#allocation2 + $0x88] sm:$0xff]
        %v914 = vld [vmem:[#allocation2 + $0x90] sm:$0xff]
        %v915 = vld [vmem:[#allocation2 + $0x98] sm:$0xff]
        %v916 = vld [vmem:[#allocation2 + $0xa0] sm:$0xff]
        %v917 = vld [vmem:[#allocation2 + $0xa8] sm:$0xff]
        %v918 = vld [vmem:[#allocation2 + $0xb0] sm:$0xff]
        %v919 = vld [vmem:[#allocation2 + $0xb8] sm:$0xff]
        %v920 = vld [vmem:[#allocation2 + $0xc0] sm:$0xff]
        %v921 = vld [vmem:[#allocation2 + $0xc8] sm:$0xff]
        %v922 = vld [vmem:[#allocation2 + $0xd0] sm:$0xff]
        %v923 = vld [vmem:[#allocation2 + $0xd8] sm:$0xff]
        %v924 = vld [vmem:[#allocation2 + $0xe0] sm:$0xff]
        %v925 = vld [vmem:[#allocation2 + $0xe8] sm:$0xff]
        %v926 = vld [vmem:[#allocation2 + $0xf0] sm:$0xff]
        %v927 = vld [vmem:[#allocation2 + $0xf8] sm:$0xff]
        %v928 = vld [vmem:[#allocation2 + $0x100] sm:$0xff]
        %v929 = vld [vmem:[#allocation2 + $0x108] sm:$0xff]
        %v930 = vld [vmem:[#allocation2 + $0x110] sm:$0xff]
        %v931 = vld [vmem:[#allocation2 + $0x118] sm:$0xff]
        %v932 = vld [vmem:[#allocation2 + $0x120] sm:$0xff]
        %v933 = vld [vmem:[#allocation2 + $0x128] sm:$0xff]
        %v934 = vld [vmem:[#allocation2 + $0x130] sm:$0xff]
        %v935 = vld [vmem:[#allocation2 + $0x138] sm:$0xff]
        %v936 = vld [vmem:[#allocation2 + $0x140] sm:$0xff]
        %v937 = vld [vmem:[#allocation2 + $0x148] sm:$0xff]
        %v938 = vld [vmem:[#allocation2 + $0x150] sm:$0xff]
        %v939 = vld [vmem:[#allocation2 + $0x158] sm:$0xff]
        %v940 = vld [vmem:[#allocation2 + $0x160] sm:$0xff]
        %v941 = vld [vmem:[#allocation2 + $0x168] sm:$0xff]
        %v942 = vld [vmem:[#allocation2 + $0x170] sm:$0xff]
        %v943 = vld [vmem:[#allocation2 + $0x178] sm:$0xff]
        %v944 = vld [vmem:[#allocation2 + $0x180] sm:$0xff]
        %v945 = vld [vmem:[#allocation2 + $0x188] sm:$0xff]
        %v946 = vld [vmem:[#allocation2 + $0x190] sm:$0xff]
        %v947 = vld [vmem:[#allocation2 + $0x198] sm:$0xff]
        %v948 = vld [vmem:[#allocation2 + $0x1a0] sm:$0xff]
        %v949 = vld [vmem:[#allocation2 + $0x1a8] sm:$0xff]
        %v950 = vld [vmem:[#allocation2 + $0x1b0] sm:$0xff]
        %v951 = vld [vmem:[#allocation2 + $0x1b8] sm:$0xff]
        %v952 = vld [vmem:[#allocation2 + $0x1c0] sm:$0xff]
        %v953 = vld [vmem:[#allocation2 + $0x1c8] sm:$0xff]
        %v954 = vld [vmem:[#allocation2 + $0x1d0] sm:$0xff]
        %v955 = vld [vmem:[#allocation2 + $0x1d8] sm:$0xff]
        %v956 = vld [vmem:[#allocation2 + $0x1e0] sm:$0xff]
        %v957 = vld [vmem:[#allocation2 + $0x1e8] sm:$0xff]
        %v958 = vld [vmem:[#allocation2 + $0x1f0] sm:$0xff]
        %v959 = vld [vmem:[#allocation2 + $0x1f8] sm:$0xff]
        %v960 = vld [vmem:[#allocation2 + $0x200] sm:$0xff]
        %v961 = vld [vmem:[#allocation2 + $0x208] sm:$0xff]
        %v962 = vld [vmem:[#allocation2 + $0x210] sm:$0xff]
        %v963 = vld [vmem:[#allocation2 + $0x218] sm:$0xff]
        %v964 = vld [vmem:[#allocation2 + $0x220] sm:$0xff]
        %v965 = vld [vmem:[#allocation2 + $0x228] sm:$0xff]
        %v966 = vld [vmem:[#allocation2 + $0x230] sm:$0xff]
        %v967 = vld [vmem:[#allocation2 + $0x238] sm:$0xff]
        %v968 = vld [vmem:[#allocation2 + $0x240] sm:$0xff]
        %v969 = vld [vmem:[#allocation2 + $0x248] sm:$0xff]
        %v970 = vld [vmem:[#allocation2 + $0x250] sm:$0xff]
        %v971 = vld [vmem:[#allocation2 + $0x258] sm:$0xff]
        %v972 = vld [vmem:[#allocation2 + $0x260] sm:$0xff]
        %v973 = vld [vmem:[#allocation2 + $0x268] sm:$0xff]
        %v974 = vld [vmem:[#allocation2 + $0x270] sm:$0xff]
        %v975 = vld [vmem:[#allocation2 + $0x278] sm:$0xff]
        %v976 = vld [vmem:[#allocation2 + $0x280] sm:$0xff]
        %v977 = vld [vmem:[#allocation2 + $0x288] sm:$0xff]
        %v978 = vld [vmem:[#allocation2 + $0x290] sm:$0xff]
        %v979 = vld [vmem:[#allocation2 + $0x298] sm:$0xff]
        %v980 = vld [vmem:[#allocation2 + $0x2a0] sm:$0xff]
        %v981 = vld [vmem:[#allocation2 + $0x2a8] sm:$0xff]
        %v982 = vld [vmem:[#allocation2 + $0x2b0] sm:$0xff]
        %v983 = vld [vmem:[#allocation2 + $0x2b8] sm:$0xff]
        %v984 = vld [vmem:[#allocation2 + $0x2c0] sm:$0xff]
        %v985 = vld [vmem:[#allocation2 + $0x2c8] sm:$0xff]
        %v986 = vld [vmem:[#allocation2 + $0x2d0] sm:$0xff]
        %v987 = vld [vmem:[#allocation2 + $0x2d8] sm:$0xff]
        %v988 = vld [vmem:[#allocation2 + $0x2e0] sm:$0xff]
        %v989 = vld [vmem:[#allocation2 + $0x2e8] sm:$0xff]
        %v990 = vld [vmem:[#allocation2 + $0x2f0] sm:$0xff]
        %v991 = vld [vmem:[#allocation2 + $0x2f8] sm:$0xff]
        %v992 = vld [vmem:[#allocation2 + $0x300] sm:$0xff]
        %v993 = vld [vmem:[#allocation2 + $0x308] sm:$0xff]
        %v994 = vld [vmem:[#allocation2 + $0x310] sm:$0xff]
        %v995 = vld [vmem:[#allocation2 + $0x318] sm:$0xff]
        %v996 = vld [vmem:[#allocation2 + $0x320] sm:$0xff]
        %v997 = vld [vmem:[#allocation2 + $0x328] sm:$0xff]
        %v998 = vld [vmem:[#allocation2 + $0x330] sm:$0xff]
        %v999 = vld [vmem:[#allocation2 + $0x338] sm:$0xff]
        %v1000 = vld [vmem:[#allocation2 + $0x340] sm:$0xff]
        %v1001 = vld [vmem:[#allocation2 + $0x348] sm:$0xff]
        %v1002 = vld [vmem:[#allocation2 + $0x350] sm:$0xff]
        %v1003 = vld [vmem:[#allocation2 + $0x358] sm:$0xff]
        %v1004 = vld [vmem:[#allocation2 + $0x360] sm:$0xff]
        %v1005 = vld [vmem:[#allocation2 + $0x368] sm:$0xff]
        %v1006 = vld [vmem:[#allocation2 + $0x370] sm:$0xff]
        %v1007 = vld [vmem:[#allocation2 + $0x378] sm:$0xff]
        %v1008 = vld [vmem:[#allocation2 + $0x380] sm:$0xff]
        %v1009 = vld [vmem:[#allocation2 + $0x388] sm:$0xff]
        %v1010 = vld [vmem:[#allocation2 + $0x390] sm:$0xff]
        %v1011 = vld [vmem:[#allocation2 + $0x398] sm:$0xff]
        %v1012 = vld [vmem:[#allocation2 + $0x3a0] sm:$0xff]
        %v1013 = vld [vmem:[#allocation2 + $0x3a8] sm:$0xff]
        %v1014 = vld [vmem:[#allocation2 + $0x3b0] sm:$0xff]
        %v1015 = vld [vmem:[#allocation2 + $0x3b8] sm:$0xff]
        %v1016 = vld [vmem:[#allocation2 + $0x3c0] sm:$0xff]
        %v1017 = vld [vmem:[#allocation2 + $0x3c8] sm:$0xff]
        %v1018 = vld [vmem:[#allocation2 + $0x3d0] sm:$0xff]
        %v1019 = vld [vmem:[#allocation2 + $0x3d8] sm:$0xff]
        %v1020 = vld [vmem:[#allocation2 + $0x3e0] sm:$0xff]
        %v1021 = vld [vmem:[#allocation2 + $0x3e8] sm:$0xff]
        %v1022 = vld [vmem:[#allocation2 + $0x3f0] sm:$0xff]
        %v1023 = vld [vmem:[#allocation2 + $0x3f8] sm:$0xff]
        %1024 = vmatprep.subr.mxu0 %v991
        %1025 = vmatpush1.msra.mxu0 %v990
        %1026 = vmatprep.subr.mxu0 %v989
        %1027 = vmatpush1.msra.mxu0 %v988
        %1028 = vmatprep.subr.mxu0 %v987
        %1029 = vmatpush1.msra.mxu0 %v986
        %1030 = vmatprep.subr.mxu0 %v985
        %1031 = vmatpush1.msra.mxu0 %v984
        %1032 = vmatprep.subr.mxu0 %v983
        %1033 = vmatpush1.msra.mxu0 %v982
        %1034 = vmatprep.subr.mxu0 %v981
        %1035 = vmatpush1.msra.mxu0 %v980
        %1036 = vmatprep.subr.mxu0 %v979
        %1037 = vmatpush1.msra.mxu0 %v978
        %1038 = vmatprep.subr.mxu0 %v977
        %1039 = vmatpush1.msra.mxu0 %v976
        %1040 = vmatprep.subr.mxu0 %v975
        %1041 = vmatpush1.msra.mxu0 %v974
        %1042 = vmatprep.subr.mxu0 %v973
        %1043 = vmatpush1.msra.mxu0 %v972
        %1044 = vmatprep.subr.mxu0 %v971
        %1045 = vmatpush1.msra.mxu0 %v970
        %1046 = vmatprep.subr.mxu0 %v969
        %1047 = vmatpush1.msra.mxu0 %v968
        %1048 = vmatprep.subr.mxu0 %v967
        %1049 = vmatpush1.msra.mxu0 %v966
        %1050 = vmatprep.subr.mxu0 %v965
        %1051 = vmatpush1.msra.mxu0 %v964
        %1052 = vmatprep.subr.mxu0 %v963
        %1053 = vmatpush1.msra.mxu0 %v962
        %1054 = vmatprep.subr.mxu0 %v961
        %1055 = vmatpush1.msra.mxu0 %v960
        %1056 = vmatprep.subr.mxu0 %v1023
        %1057 = vmatpush2.msra.mxu0 %v1022
        %1058 = vmatprep.subr.mxu0 %v1021
        %1059 = vmatpush2.msra.mxu0 %v1020
        %1060 = vmatprep.subr.mxu0 %v1019
        %1061 = vmatpush2.msra.mxu0 %v1018
        %1062 = vmatprep.subr.mxu0 %v1017
        %1063 = vmatpush2.msra.mxu0 %v1016
        %1064 = vmatprep.subr.mxu0 %v1015
        %1065 = vmatpush2.msra.mxu0 %v1014
        %1066 = vmatprep.subr.mxu0 %v1013
        %1067 = vmatpush2.msra.mxu0 %v1012
        %1068 = vmatprep.subr.mxu0 %v1011
        %1069 = vmatpush2.msra.mxu0 %v1010
        %1070 = vmatprep.subr.mxu0 %v1009
        %1071 = vmatpush2.msra.mxu0 %v1008
        %1072 = vmatprep.subr.mxu0 %v1007
        %1073 = vmatpush2.msra.mxu0 %v1006
        %1074 = vmatprep.subr.mxu0 %v1005
        %1075 = vmatpush2.msra.mxu0 %v1004
        %1076 = vmatprep.subr.mxu0 %v1003
        %1077 = vmatpush2.msra.mxu0 %v1002
        %1078 = vmatprep.subr.mxu0 %v1001
        %1079 = vmatpush2.msra.mxu0 %v1000
        %1080 = vmatprep.subr.mxu0 %v999
        %1081 = vmatpush2.msra.mxu0 %v998
        %1082 = vmatprep.subr.mxu0 %v997
        %1083 = vmatpush2.msra.mxu0 %v996
        %1084 = vmatprep.subr.mxu0 %v995
        %1085 = vmatpush2.msra.mxu0 %v994
        %1086 = vmatprep.subr.mxu0 %v993
        %1087 = vmatpush2.msra.mxu0 %v992
        %1088 = vmatprep.mubr.f32.mxu0 %v895
        %1089 = vmatmul.mubr.f32.gmra.mxu0 %v888
        %v1090 = vpop.f32.mrf.mxu0
        %v1091 = vadd.f32 0.0, %v1090
        %v1092 = vpop.f32.mrf.mxu0
        %v1093 = vadd.f32 0.0, %v1092
        %1094 = vdwg.mxu0
        %1095 = vmatprep.subr.mxu0 %v927
        %1096 = vmatpush1.msra.mxu0 %v926
        %1097 = vmatprep.subr.mxu0 %v925
        %1098 = vmatpush1.msra.mxu0 %v924
        %1099 = vmatprep.subr.mxu0 %v923
        %1100 = vmatpush1.msra.mxu0 %v922
        %1101 = vmatprep.subr.mxu0 %v921
        %1102 = vmatpush1.msra.mxu0 %v920
        %1103 = vmatprep.subr.mxu0 %v919
        %1104 = vmatpush1.msra.mxu0 %v918
        %1105 = vmatprep.subr.mxu0 %v917
        %1106 = vmatpush1.msra.mxu0 %v916
        %1107 = vmatprep.subr.mxu0 %v915
        %1108 = vmatpush1.msra.mxu0 %v914
        %1109 = vmatprep.subr.mxu0 %v913
        %1110 = vmatpush1.msra.mxu0 %v912
        %1111 = vmatprep.subr.mxu0 %v911
        %1112 = vmatpush1.msra.mxu0 %v910
        %1113 = vmatprep.subr.mxu0 %v909
        %1114 = vmatpush1.msra.mxu0 %v908
        %1115 = vmatprep.subr.mxu0 %v907
        %1116 = vmatpush1.msra.mxu0 %v906
        %1117 = vmatprep.subr.mxu0 %v905
        %1118 = vmatpush1.msra.mxu0 %v904
        %1119 = vmatprep.subr.mxu0 %v903
        %1120 = vmatpush1.msra.mxu0 %v902
        %1121 = vmatprep.subr.mxu0 %v901
        %1122 = vmatpush1.msra.mxu0 %v900
        %1123 = vmatprep.subr.mxu0 %v899
        %1124 = vmatpush1.msra.mxu0 %v898
        %1125 = vmatprep.subr.mxu0 %v897
        %1126 = vmatpush1.msra.mxu0 %v896
        %1127 = vmatprep.subr.mxu0 %v959
        %1128 = vmatpush2.msra.mxu0 %v958
        %1129 = vmatprep.subr.mxu0 %v957
        %1130 = vmatpush2.msra.mxu0 %v956
        %1131 = vmatprep.subr.mxu0 %v955
        %1132 = vmatpush2.msra.mxu0 %v954
        %1133 = vmatprep.subr.mxu0 %v953
        %1134 = vmatpush2.msra.mxu0 %v952
        %1135 = vmatprep.subr.mxu0 %v951
        %1136 = vmatpush2.msra.mxu0 %v950
        %1137 = vmatprep.subr.mxu0 %v949
        %1138 = vmatpush2.msra.mxu0 %v948
        %1139 = vmatprep.subr.mxu0 %v947
        %1140 = vmatpush2.msra.mxu0 %v946
        %1141 = vmatprep.subr.mxu0 %v945
        %1142 = vmatpush2.msra.mxu0 %v944
        %1143 = vmatprep.subr.mxu0 %v943
        %1144 = vmatpush2.msra.mxu0 %v942
        %1145 = vmatprep.subr.mxu0 %v941
        %1146 = vmatpush2.msra.mxu0 %v940
        %1147 = vmatprep.subr.mxu0 %v939
        %1148 = vmatpush2.msra.mxu0 %v938
        %1149 = vmatprep.subr.mxu0 %v937
        %1150 = vmatpush2.msra.mxu0 %v936
        %1151 = vmatprep.subr.mxu0 %v935
        %1152 = vmatpush2.msra.mxu0 %v934
        %1153 = vmatprep.subr.mxu0 %v933
        %1154 = vmatpush2.msra.mxu0 %v932
        %1155 = vmatprep.subr.mxu0 %v931
        %1156 = vmatpush2.msra.mxu0 %v930
        %1157 = vmatprep.subr.mxu0 %v929
        %1158 = vmatpush2.msra.mxu0 %v928
        %1159 = vmatprep.mubr.f32.mxu0 %v881
        %1160 = vmatmul.mubr.f32.gmra.mxu0 %v880
        %v1161 = vpop.f32.mrf.mxu0
        %v1162 = vadd.f32 %v1091, %v1161
        %v1163 = vpop.f32.mrf.mxu0
        %v1164 = vadd.f32 %v1093, %v1163
        %1165 = vdwg.mxu0
        %v1166 = vld [vmem:[%s7] sm:$0x1]
        %1168 = vset.pattern.permute.xlu0 0
        %1169 = vperm.xlu0 %1168, %v1166
        %v1170 = vpop.permute.xlu0 %1169
        %v1172 = vlaneseq
        %v1173 = vshrl.u32 %v1172, 7
        %v1174 = vsub.s32 0, %v1173
        %v1175 = vrot.slane %v1170, %v1174
        %v1176 = vadd.f32 %v1162, %v1175
        %v1177 = vadd.f32 %v1164, %v1175
        %v1178 = vxor.u32 %v1176, 2147483648
        %v1179 = vxor.u32 %v1177, 2147483648
        %v1180 = vmul.f32 %v1178, 1.442695
        %v1181 = vpow.pop %v1180
        %v1182 = vmul.f32 %v1179, 1.442695
        %v1183 = vpow.pop %v1182
        %v1184 = vadd.f32 %v1181, 1.0
        %v1185 = vadd.f32 %v1183, 1.0
        %v1186 = vrcp.pop %v1184
        %v1187 = vmul.f32 1.0, %v1186
        %v1188 = vrcp.pop %v1185
        %v1189 = vmul.f32 1.0, %v1188
        %v1190 = vlaneseq
        %v1191 = vshrl.u32 %v1190, 7
        %v1192 = vsub.s32 0, %v1191
        %v1193 = vrot.slane %v1187, %v1192
        %v1194 = vlaneseq
        %v1195 = vshrl.u32 %v1194, 7
        %v1196 = vsub.s32 0, %v1195
        %v1197 = vrot.slane %v1189, %v1196
        %v1198 = vmul.f32 %v861, %v1193
        %v1199 = vmul.f32 %v862, %v1197
        %v1200 = vmul.f32 %v863, %v1193
        %v1201 = vmul.f32 %v864, %v1197
        %v1202 = vadd.f32 %v505, %v506
        %1203 = vadd.xlane.f32.xlu0 %v1202
        %v1204 = vpop.xlane.xlu0 %1203
        %v1205 = vadd.f32 %v507, %v508
        %1206 = vadd.xlane.f32.xlu0 %v1205
        %v1207 = vpop.xlane.xlu0 %1206
        %v1208 = vmul.f32 %v1204, %v766
        %v1209 = vmul.f32 %v1207, %v766
        %v1210 = vmax.f32 %v505, %v506
        %1211 = vmax.xlane.f32.xlu0 %v1210
        %v1212 = vpop.xlane.xlu0 %1211
        %v1213 = vmax.f32 %v507, %v508
        %1214 = vmax.xlane.f32.xlu0 %v1213
        %v1215 = vpop.xlane.xlu0 %1214
        %s1216 = scalar_lea.vmem %s2, 16
        %v1217 = vld [vmem:[%s1216] sm:$0xff]
        %v1218 = vld [vmem:[%s1216 + $0x8] sm:$0xff]
        %s1219 = scalar_lea.vmem %s3, 1
        %v1220 = vld [vmem:[%s1219] sm:$0x1]
        %s1221 = scalar_lea.vmem %s4, 16
        %v1222 = vld [vmem:[%s1221] sm:$0xff]
        %v1223 = vld [vmem:[%s1221 + $0x8] sm:$0xff]
        %s1224 = scalar_lea.vmem %s5, 16
        %v1225 = vld [vmem:[%s1224] sm:$0xff]
        %v1226 = vld [vmem:[%s1224 + $0x8] sm:$0xff]
        %v1227 = vmul.f32 %v1217, %v1208
        %v1228 = vmul.f32 %v1218, %v1209
        %v1229 = vsel %vm784, %v1227, 0.0
        %v1230 = vsel %vm784, %v1228, 0.0
        %v1231 = vadd.f32 %v1229, %v1230
        %v1232 = vrot.slane %v1231, 4
        %v1233 = vadd.f32 %v1231, %v1232
        %v1234 = vrot.slane %v1233, 2
        %v1235 = vadd.f32 %v1233, %v1234
        %v1236 = vrot.slane %v1235, 1
        %v1237 = vadd.f32 %v1235, %v1236
        %v1238 = vadd.f32 %v1237, %v1220
        %v1239 = vmax.f32 %v1238, 0.0
        %v1240 = vlaneseq
        %v1241 = vshrl.u32 %v1240, 7
        %v1242 = vsub.s32 0, %v1241
        %v1243 = vrot.slane %v1239, %v1242
        %v1244 = vmul.f32 %v1222, %v1243
        %v1245 = vmul.f32 %v1223, %v1243
        %v1246 = vsel %vm784, %v1244, 0.0
        %1247 = vadd.xlane.f32.xlu0 %v1246
        %v1248 = vpop.xlane.xlu0 %1247
        %v1249 = vsel %vm784, %v1245, 0.0
        %1250 = vadd.xlane.f32.xlu0 %v1249
        %v1251 = vpop.xlane.xlu0 %1250
        %v1252 = vadd.f32 %v1248, %v1225
        %v1253 = vadd.f32 %v1251, %v1226
        %v1254 = vmul.f32 %v1217, %v1212
        %v1255 = vmul.f32 %v1218, %v1215
        %v1256 = vsel %vm784, %v1254, 0.0
        %v1257 = vsel %vm784, %v1255, 0.0
        %v1258 = vadd.f32 %v1256, %v1257
        %v1259 = vrot.slane %v1258, 4
        %v1260 = vadd.f32 %v1258, %v1259
        %v1261 = vrot.slane %v1260, 2
        %v1262 = vadd.f32 %v1260, %v1261
        %v1263 = vrot.slane %v1262, 1
        %v1264 = vadd.f32 %v1262, %v1263
        %v1265 = vadd.f32 %v1264, %v1220
        %v1266 = vmax.f32 %v1265, 0.0
        %v1267 = vlaneseq
        %v1268 = vshrl.u32 %v1267, 7
        %v1269 = vsub.s32 0, %v1268
        %v1270 = vrot.slane %v1266, %v1269
        %v1271 = vmul.f32 %v1222, %v1270
        %v1272 = vmul.f32 %v1223, %v1270
        %v1273 = vsel %vm784, %v1271, 0.0
        %1274 = vadd.xlane.f32.xlu0 %v1273
        %v1275 = vpop.xlane.xlu0 %1274
        %v1276 = vsel %vm784, %v1272, 0.0
        %1277 = vadd.xlane.f32.xlu0 %v1276
        %v1278 = vpop.xlane.xlu0 %1277
        %v1279 = vadd.f32 %v1275, %v1225
        %v1280 = vadd.f32 %v1278, %v1226
        %v1281 = vadd.f32 %v1252, %v1279
        %v1282 = vadd.f32 %v1253, %v1280
        %v1283 = vxor.u32 %v1281, 2147483648
        %v1284 = vxor.u32 %v1282, 2147483648
        %v1285 = vmul.f32 %v1283, 1.442695
        %v1286 = vpow.pop %v1285
        %v1287 = vmul.f32 %v1284, 1.442695
        %v1288 = vpow.pop %v1287
        %v1289 = vadd.f32 %v1286, 1.0
        %v1290 = vadd.f32 %v1288, 1.0
        %v1291 = vrcp.pop %v1289
        %v1292 = vmul.f32 1.0, %v1291
        %v1293 = vrcp.pop %v1290
        %v1294 = vmul.f32 1.0, %v1293
        %1296 = vset.pattern.permute.xlu0 0
        %1297 = vperm.xlu0 %1296, %v1292
        %v1298 = vpop.permute.xlu0 %1297
        %1301 = vset.pattern.permute.xlu0 0
        %1302 = vperm.xlu0 %1301, %v1294
        %v1303 = vpop.permute.xlu0 %1302
        %v1305 = vmul.f32 %v505, %v1298
        %v1306 = vmul.f32 %v506, %v1298
        %v1307 = vmul.f32 %v507, %v1303
        %v1308 = vmul.f32 %v508, %v1303
        %v1309 = vadd.f32 %v1305, %v1307
        %v1310 = vrot.slane %v1309, 4
        %v1311 = vadd.f32 %v1309, %v1310
        %v1312 = vrot.slane %v1311, 2
        %v1313 = vadd.f32 %v1311, %v1312
        %v1314 = vrot.slane %v1313, 1
        %v1315 = vadd.f32 %v1313, %v1314
        %v1316 = vadd.f32 %v1306, %v1308
        %v1317 = vrot.slane %v1316, 4
        %v1318 = vadd.f32 %v1316, %v1317
        %v1319 = vrot.slane %v1318, 2
        %v1320 = vadd.f32 %v1318, %v1319
        %v1321 = vrot.slane %v1320, 1
        %v1322 = vadd.f32 %v1320, %v1321
        %v1323 = vmul.f32 %v1315, %v879
        %v1324 = vmul.f32 %v1322, %v879
        %v1325 = vmax.f32 %v1305, %v1307
        %v1326 = vrot.slane %v1325, 4
        %v1327 = vmax.f32 %v1325, %v1326
        %v1328 = vrot.slane %v1327, 2
        %v1329 = vmax.f32 %v1327, %v1328
        %v1330 = vrot.slane %v1329, 1
        %v1331 = vmax.f32 %v1329, %v1330
        %v1332 = vmax.f32 %v1306, %v1308
        %v1333 = vrot.slane %v1332, 4
        %v1334 = vmax.f32 %v1332, %v1333
        %v1335 = vrot.slane %v1334, 2
        %v1336 = vmax.f32 %v1334, %v1335
        %v1337 = vrot.slane %v1336, 1
        %v1338 = vmax.f32 %v1336, %v1337
        %s1339 = scalar_lea.vmem [#allocation2], 1024
        %v1340 = vld [vmem:[%s1339] sm:$0xff]
        %v1341 = vld [vmem:[%s1339 + $0x8] sm:$0xff]
        %v1342 = vld [vmem:[%s1339 + $0x10] sm:$0xff]
        %v1343 = vld [vmem:[%s1339 + $0x18] sm:$0xff]
        %v1344 = vld [vmem:[%s1339 + $0x20] sm:$0xff]
        %v1345 = vld [vmem:[%s1339 + $0x28] sm:$0xff]
        %v1346 = vld [vmem:[%s1339 + $0x30] sm:$0xff]
        %v1347 = vld [vmem:[%s1339 + $0x38] sm:$0xff]
        %v1348 = vld [vmem:[%s1339 + $0x40] sm:$0xff]
        %v1349 = vld [vmem:[%s1339 + $0x48] sm:$0xff]
        %v1350 = vld [vmem:[%s1339 + $0x50] sm:$0xff]
        %v1351 = vld [vmem:[%s1339 + $0x58] sm:$0xff]
        %v1352 = vld [vmem:[%s1339 + $0x60] sm:$0xff]
        %v1353 = vld [vmem:[%s1339 + $0x68] sm:$0xff]
        %v1354 = vld [vmem:[%s1339 + $0x70] sm:$0xff]
        %v1355 = vld [vmem:[%s1339 + $0x78] sm:$0xff]
        %v1356 = vld [vmem:[%s1339 + $0x80] sm:$0xff]
        %v1357 = vld [vmem:[%s1339 + $0x88] sm:$0xff]
        %v1358 = vld [vmem:[%s1339 + $0x90] sm:$0xff]
        %v1359 = vld [vmem:[%s1339 + $0x98] sm:$0xff]
        %v1360 = vld [vmem:[%s1339 + $0xa0] sm:$0xff]
        %v1361 = vld [vmem:[%s1339 + $0xa8] sm:$0xff]
        %v1362 = vld [vmem:[%s1339 + $0xb0] sm:$0xff]
        %v1363 = vld [vmem:[%s1339 + $0xb8] sm:$0xff]
        %v1364 = vld [vmem:[%s1339 + $0xc0] sm:$0xff]
        %v1365 = vld [vmem:[%s1339 + $0xc8] sm:$0xff]
        %v1366 = vld [vmem:[%s1339 + $0xd0] sm:$0xff]
        %v1367 = vld [vmem:[%s1339 + $0xd8] sm:$0xff]
        %v1368 = vld [vmem:[%s1339 + $0xe0] sm:$0xff]
        %v1369 = vld [vmem:[%s1339 + $0xe8] sm:$0xff]
        %v1370 = vld [vmem:[%s1339 + $0xf0] sm:$0xff]
        %v1371 = vld [vmem:[%s1339 + $0xf8] sm:$0xff]
        %v1372 = vld [vmem:[%s1339 + $0x100] sm:$0xff]
        %v1373 = vld [vmem:[%s1339 + $0x108] sm:$0xff]
        %v1374 = vld [vmem:[%s1339 + $0x110] sm:$0xff]
        %v1375 = vld [vmem:[%s1339 + $0x118] sm:$0xff]
        %v1376 = vld [vmem:[%s1339 + $0x120] sm:$0xff]
        %v1377 = vld [vmem:[%s1339 + $0x128] sm:$0xff]
        %v1378 = vld [vmem:[%s1339 + $0x130] sm:$0xff]
        %v1379 = vld [vmem:[%s1339 + $0x138] sm:$0xff]
        %v1380 = vld [vmem:[%s1339 + $0x140] sm:$0xff]
        %v1381 = vld [vmem:[%s1339 + $0x148] sm:$0xff]
        %v1382 = vld [vmem:[%s1339 + $0x150] sm:$0xff]
        %v1383 = vld [vmem:[%s1339 + $0x158] sm:$0xff]
        %v1384 = vld [vmem:[%s1339 + $0x160] sm:$0xff]
        %v1385 = vld [vmem:[%s1339 + $0x168] sm:$0xff]
        %v1386 = vld [vmem:[%s1339 + $0x170] sm:$0xff]
        %v1387 = vld [vmem:[%s1339 + $0x178] sm:$0xff]
        %v1388 = vld [vmem:[%s1339 + $0x180] sm:$0xff]
        %v1389 = vld [vmem:[%s1339 + $0x188] sm:$0xff]
        %v1390 = vld [vmem:[%s1339 + $0x190] sm:$0xff]
        %v1391 = vld [vmem:[%s1339 + $0x198] sm:$0xff]
        %v1392 = vld [vmem:[%s1339 + $0x1a0] sm:$0xff]
        %v1393 = vld [vmem:[%s1339 + $0x1a8] sm:$0xff]
        %v1394 = vld [vmem:[%s1339 + $0x1b0] sm:$0xff]
        %v1395 = vld [vmem:[%s1339 + $0x1b8] sm:$0xff]
        %v1396 = vld [vmem:[%s1339 + $0x1c0] sm:$0xff]
        %v1397 = vld [vmem:[%s1339 + $0x1c8] sm:$0xff]
        %v1398 = vld [vmem:[%s1339 + $0x1d0] sm:$0xff]
        %v1399 = vld [vmem:[%s1339 + $0x1d8] sm:$0xff]
        %v1400 = vld [vmem:[%s1339 + $0x1e0] sm:$0xff]
        %v1401 = vld [vmem:[%s1339 + $0x1e8] sm:$0xff]
        %v1402 = vld [vmem:[%s1339 + $0x1f0] sm:$0xff]
        %v1403 = vld [vmem:[%s1339 + $0x1f8] sm:$0xff]
        %v1404 = vld [vmem:[%s1339 + $0x200] sm:$0xff]
        %v1405 = vld [vmem:[%s1339 + $0x208] sm:$0xff]
        %v1406 = vld [vmem:[%s1339 + $0x210] sm:$0xff]
        %v1407 = vld [vmem:[%s1339 + $0x218] sm:$0xff]
        %v1408 = vld [vmem:[%s1339 + $0x220] sm:$0xff]
        %v1409 = vld [vmem:[%s1339 + $0x228] sm:$0xff]
        %v1410 = vld [vmem:[%s1339 + $0x230] sm:$0xff]
        %v1411 = vld [vmem:[%s1339 + $0x238] sm:$0xff]
        %v1412 = vld [vmem:[%s1339 + $0x240] sm:$0xff]
        %v1413 = vld [vmem:[%s1339 + $0x248] sm:$0xff]
        %v1414 = vld [vmem:[%s1339 + $0x250] sm:$0xff]
        %v1415 = vld [vmem:[%s1339 + $0x258] sm:$0xff]
        %v1416 = vld [vmem:[%s1339 + $0x260] sm:$0xff]
        %v1417 = vld [vmem:[%s1339 + $0x268] sm:$0xff]
        %v1418 = vld [vmem:[%s1339 + $0x270] sm:$0xff]
        %v1419 = vld [vmem:[%s1339 + $0x278] sm:$0xff]
        %v1420 = vld [vmem:[%s1339 + $0x280] sm:$0xff]
        %v1421 = vld [vmem:[%s1339 + $0x288] sm:$0xff]
        %v1422 = vld [vmem:[%s1339 + $0x290] sm:$0xff]
        %v1423 = vld [vmem:[%s1339 + $0x298] sm:$0xff]
        %v1424 = vld [vmem:[%s1339 + $0x2a0] sm:$0xff]
        %v1425 = vld [vmem:[%s1339 + $0x2a8] sm:$0xff]
        %v1426 = vld [vmem:[%s1339 + $0x2b0] sm:$0xff]
        %v1427 = vld [vmem:[%s1339 + $0x2b8] sm:$0xff]
        %v1428 = vld [vmem:[%s1339 + $0x2c0] sm:$0xff]
        %v1429 = vld [vmem:[%s1339 + $0x2c8] sm:$0xff]
        %v1430 = vld [vmem:[%s1339 + $0x2d0] sm:$0xff]
        %v1431 = vld [vmem:[%s1339 + $0x2d8] sm:$0xff]
        %v1432 = vld [vmem:[%s1339 + $0x2e0] sm:$0xff]
        %v1433 = vld [vmem:[%s1339 + $0x2e8] sm:$0xff]
        %v1434 = vld [vmem:[%s1339 + $0x2f0] sm:$0xff]
        %v1435 = vld [vmem:[%s1339 + $0x2f8] sm:$0xff]
        %v1436 = vld [vmem:[%s1339 + $0x300] sm:$0xff]
        %v1437 = vld [vmem:[%s1339 + $0x308] sm:$0xff]
        %v1438 = vld [vmem:[%s1339 + $0x310] sm:$0xff]
        %v1439 = vld [vmem:[%s1339 + $0x318] sm:$0xff]
        %v1440 = vld [vmem:[%s1339 + $0x320] sm:$0xff]
        %v1441 = vld [vmem:[%s1339 + $0x328] sm:$0xff]
        %v1442 = vld [vmem:[%s1339 + $0x330] sm:$0xff]
        %v1443 = vld [vmem:[%s1339 + $0x338] sm:$0xff]
        %v1444 = vld [vmem:[%s1339 + $0x340] sm:$0xff]
        %v1445 = vld [vmem:[%s1339 + $0x348] sm:$0xff]
        %v1446 = vld [vmem:[%s1339 + $0x350] sm:$0xff]
        %v1447 = vld [vmem:[%s1339 + $0x358] sm:$0xff]
        %v1448 = vld [vmem:[%s1339 + $0x360] sm:$0xff]
        %v1449 = vld [vmem:[%s1339 + $0x368] sm:$0xff]
        %v1450 = vld [vmem:[%s1339 + $0x370] sm:$0xff]
        %v1451 = vld [vmem:[%s1339 + $0x378] sm:$0xff]
        %v1452 = vld [vmem:[%s1339 + $0x380] sm:$0xff]
        %v1453 = vld [vmem:[%s1339 + $0x388] sm:$0xff]
        %v1454 = vld [vmem:[%s1339 + $0x390] sm:$0xff]
        %v1455 = vld [vmem:[%s1339 + $0x398] sm:$0xff]
        %v1456 = vld [vmem:[%s1339 + $0x3a0] sm:$0xff]
        %v1457 = vld [vmem:[%s1339 + $0x3a8] sm:$0xff]
        %v1458 = vld [vmem:[%s1339 + $0x3b0] sm:$0xff]
        %v1459 = vld [vmem:[%s1339 + $0x3b8] sm:$0xff]
        %v1460 = vld [vmem:[%s1339 + $0x3c0] sm:$0xff]
        %v1461 = vld [vmem:[%s1339 + $0x3c8] sm:$0xff]
        %v1462 = vld [vmem:[%s1339 + $0x3d0] sm:$0xff]
        %v1463 = vld [vmem:[%s1339 + $0x3d8] sm:$0xff]
        %v1464 = vld [vmem:[%s1339 + $0x3e0] sm:$0xff]
        %v1465 = vld [vmem:[%s1339 + $0x3e8] sm:$0xff]
        %v1466 = vld [vmem:[%s1339 + $0x3f0] sm:$0xff]
        %v1467 = vld [vmem:[%s1339 + $0x3f8] sm:$0xff]
        %1468 = vmatprep.subr.mxu0 %v1435
        %1469 = vmatpush1.msra.mxu0 %v1434
        %1470 = vmatprep.subr.mxu0 %v1433
        %1471 = vmatpush1.msra.mxu0 %v1432
        %1472 = vmatprep.subr.mxu0 %v1431
        %1473 = vmatpush1.msra.mxu0 %v1430
        %1474 = vmatprep.subr.mxu0 %v1429
        %1475 = vmatpush1.msra.mxu0 %v1428
        %1476 = vmatprep.subr.mxu0 %v1427
        %1477 = vmatpush1.msra.mxu0 %v1426
        %1478 = vmatprep.subr.mxu0 %v1425
        %1479 = vmatpush1.msra.mxu0 %v1424
        %1480 = vmatprep.subr.mxu0 %v1423
        %1481 = vmatpush1.msra.mxu0 %v1422
        %1482 = vmatprep.subr.mxu0 %v1421
        %1483 = vmatpush1.msra.mxu0 %v1420
        %1484 = vmatprep.subr.mxu0 %v1419
        %1485 = vmatpush1.msra.mxu0 %v1418
        %1486 = vmatprep.subr.mxu0 %v1417
        %1487 = vmatpush1.msra.mxu0 %v1416
        %1488 = vmatprep.subr.mxu0 %v1415
        %1489 = vmatpush1.msra.mxu0 %v1414
        %1490 = vmatprep.subr.mxu0 %v1413
        %1491 = vmatpush1.msra.mxu0 %v1412
        %1492 = vmatprep.subr.mxu0 %v1411
        %1493 = vmatpush1.msra.mxu0 %v1410
        %1494 = vmatprep.subr.mxu0 %v1409
        %1495 = vmatpush1.msra.mxu0 %v1408
        %1496 = vmatprep.subr.mxu0 %v1407
        %1497 = vmatpush1.msra.mxu0 %v1406
        %1498 = vmatprep.subr.mxu0 %v1405
        %1499 = vmatpush1.msra.mxu0 %v1404
        %1500 = vmatprep.subr.mxu0 %v1467
        %1501 = vmatpush2.msra.mxu0 %v1466
        %1502 = vmatprep.subr.mxu0 %v1465
        %1503 = vmatpush2.msra.mxu0 %v1464
        %1504 = vmatprep.subr.mxu0 %v1463
        %1505 = vmatpush2.msra.mxu0 %v1462
        %1506 = vmatprep.subr.mxu0 %v1461
        %1507 = vmatpush2.msra.mxu0 %v1460
        %1508 = vmatprep.subr.mxu0 %v1459
        %1509 = vmatpush2.msra.mxu0 %v1458
        %1510 = vmatprep.subr.mxu0 %v1457
        %1511 = vmatpush2.msra.mxu0 %v1456
        %1512 = vmatprep.subr.mxu0 %v1455
        %1513 = vmatpush2.msra.mxu0 %v1454
        %1514 = vmatprep.subr.mxu0 %v1453
        %1515 = vmatpush2.msra.mxu0 %v1452
        %1516 = vmatprep.subr.mxu0 %v1451
        %1517 = vmatpush2.msra.mxu0 %v1450
        %1518 = vmatprep.subr.mxu0 %v1449
        %1519 = vmatpush2.msra.mxu0 %v1448
        %1520 = vmatprep.subr.mxu0 %v1447
        %1521 = vmatpush2.msra.mxu0 %v1446
        %1522 = vmatprep.subr.mxu0 %v1445
        %1523 = vmatpush2.msra.mxu0 %v1444
        %1524 = vmatprep.subr.mxu0 %v1443
        %1525 = vmatpush2.msra.mxu0 %v1442
        %1526 = vmatprep.subr.mxu0 %v1441
        %1527 = vmatpush2.msra.mxu0 %v1440
        %1528 = vmatprep.subr.mxu0 %v1439
        %1529 = vmatpush2.msra.mxu0 %v1438
        %1530 = vmatprep.subr.mxu0 %v1437
        %1531 = vmatpush2.msra.mxu0 %v1436
        %1532 = vmatprep.mubr.f32.mxu0 %v1338
        %1533 = vmatmul.mubr.f32.gmra.mxu0 %v1331
        %v1534 = vpop.f32.mrf.mxu0
        %v1535 = vadd.f32 0.0, %v1534
        %v1536 = vpop.f32.mrf.mxu0
        %v1537 = vadd.f32 0.0, %v1536
        %1538 = vdwg.mxu0
        %1539 = vmatprep.subr.mxu0 %v1371
        %1540 = vmatpush1.msra.mxu0 %v1370
        %1541 = vmatprep.subr.mxu0 %v1369
        %1542 = vmatpush1.msra.mxu0 %v1368
        %1543 = vmatprep.subr.mxu0 %v1367
        %1544 = vmatpush1.msra.mxu0 %v1366
        %1545 = vmatprep.subr.mxu0 %v1365
        %1546 = vmatpush1.msra.mxu0 %v1364
        %1547 = vmatprep.subr.mxu0 %v1363
        %1548 = vmatpush1.msra.mxu0 %v1362
        %1549 = vmatprep.subr.mxu0 %v1361
        %1550 = vmatpush1.msra.mxu0 %v1360
        %1551 = vmatprep.subr.mxu0 %v1359
        %1552 = vmatpush1.msra.mxu0 %v1358
        %1553 = vmatprep.subr.mxu0 %v1357
        %1554 = vmatpush1.msra.mxu0 %v1356
        %1555 = vmatprep.subr.mxu0 %v1355
        %1556 = vmatpush1.msra.mxu0 %v1354
        %1557 = vmatprep.subr.mxu0 %v1353
        %1558 = vmatpush1.msra.mxu0 %v1352
        %1559 = vmatprep.subr.mxu0 %v1351
        %1560 = vmatpush1.msra.mxu0 %v1350
        %1561 = vmatprep.subr.mxu0 %v1349
        %1562 = vmatpush1.msra.mxu0 %v1348
        %1563 = vmatprep.subr.mxu0 %v1347
        %1564 = vmatpush1.msra.mxu0 %v1346
        %1565 = vmatprep.subr.mxu0 %v1345
        %1566 = vmatpush1.msra.mxu0 %v1344
        %1567 = vmatprep.subr.mxu0 %v1343
        %1568 = vmatpush1.msra.mxu0 %v1342
        %1569 = vmatprep.subr.mxu0 %v1341
        %1570 = vmatpush1.msra.mxu0 %v1340
        %1571 = vmatprep.subr.mxu0 %v1403
        %1572 = vmatpush2.msra.mxu0 %v1402
        %1573 = vmatprep.subr.mxu0 %v1401
        %1574 = vmatpush2.msra.mxu0 %v1400
        %1575 = vmatprep.subr.mxu0 %v1399
        %1576 = vmatpush2.msra.mxu0 %v1398
        %1577 = vmatprep.subr.mxu0 %v1397
        %1578 = vmatpush2.msra.mxu0 %v1396
        %1579 = vmatprep.subr.mxu0 %v1395
        %1580 = vmatpush2.msra.mxu0 %v1394
        %1581 = vmatprep.subr.mxu0 %v1393
        %1582 = vmatpush2.msra.mxu0 %v1392
        %1583 = vmatprep.subr.mxu0 %v1391
        %1584 = vmatpush2.msra.mxu0 %v1390
        %1585 = vmatprep.subr.mxu0 %v1389
        %1586 = vmatpush2.msra.mxu0 %v1388
        %1587 = vmatprep.subr.mxu0 %v1387
        %1588 = vmatpush2.msra.mxu0 %v1386
        %1589 = vmatprep.subr.mxu0 %v1385
        %1590 = vmatpush2.msra.mxu0 %v1384
        %1591 = vmatprep.subr.mxu0 %v1383
        %1592 = vmatpush2.msra.mxu0 %v1382
        %1593 = vmatprep.subr.mxu0 %v1381
        %1594 = vmatpush2.msra.mxu0 %v1380
        %1595 = vmatprep.subr.mxu0 %v1379
        %1596 = vmatpush2.msra.mxu0 %v1378
        %1597 = vmatprep.subr.mxu0 %v1377
        %1598 = vmatpush2.msra.mxu0 %v1376
        %1599 = vmatprep.subr.mxu0 %v1375
        %1600 = vmatpush2.msra.mxu0 %v1374
        %1601 = vmatprep.subr.mxu0 %v1373
        %1602 = vmatpush2.msra.mxu0 %v1372
        %1603 = vmatprep.mubr.f32.mxu0 %v1324
        %1604 = vmatmul.mubr.f32.gmra.mxu0 %v1323
        %v1605 = vpop.f32.mrf.mxu0
        %v1606 = vadd.f32 %v1535, %v1605
        %v1607 = vpop.f32.mrf.mxu0
        %v1608 = vadd.f32 %v1537, %v1607
        %1609 = vdwg.mxu0
        %s1610 = scalar_lea.vmem %s7, 1
        %v1611 = vld [vmem:[%s1610] sm:$0x1]
        %1613 = vset.pattern.permute.xlu0 0
        %1614 = vperm.xlu0 %1613, %v1611
        %v1615 = vpop.permute.xlu0 %1614
        %v1617 = vlaneseq
        %v1618 = vshrl.u32 %v1617, 7
        %v1619 = vsub.s32 0, %v1618
        %v1620 = vrot.slane %v1615, %v1619
        %v1621 = vadd.f32 %v1606, %v1620
        %v1622 = vadd.f32 %v1608, %v1620
        %v1623 = vxor.u32 %v1621, 2147483648
        %v1624 = vxor.u32 %v1622, 2147483648
        %v1625 = vmul.f32 %v1623, 1.442695
        %v1626 = vpow.pop %v1625
        %v1627 = vmul.f32 %v1624, 1.442695
        %v1628 = vpow.pop %v1627
        %v1629 = vadd.f32 %v1626, 1.0
        %v1630 = vadd.f32 %v1628, 1.0
        %v1631 = vrcp.pop %v1629
        %v1632 = vmul.f32 1.0, %v1631
        %v1633 = vrcp.pop %v1630
        %v1634 = vmul.f32 1.0, %v1633
        %v1635 = vlaneseq
        %v1636 = vshrl.u32 %v1635, 7
        %v1637 = vsub.s32 0, %v1636
        %v1638 = vrot.slane %v1632, %v1637
        %v1639 = vlaneseq
        %v1640 = vshrl.u32 %v1639, 7
        %v1641 = vsub.s32 0, %v1640
        %v1642 = vrot.slane %v1634, %v1641
        %v1643 = vmul.f32 %v1305, %v1638
        %v1644 = vmul.f32 %v1306, %v1642
        %v1645 = vmul.f32 %v1307, %v1638
        %v1646 = vmul.f32 %v1308, %v1642
        %v1647 = vld [vmem:[%s11] sm:$0xff]
        %v1648 = vld [vmem:[%s11 + $0x8] sm:$0xff]
        %v1649 = vld [vmem:[%s11 + $0x10] sm:$0xff]
        %v1650 = vld [vmem:[%s11 + $0x18] sm:$0xff]
        %v1651 = vld [vmem:[%s12] sm:$0xff]
        %v1652 = vld [vmem:[%s12 + $0x8] sm:$0xff]
        %v1653 = vld [vmem:[%s12 + $0x10] sm:$0xff]
        %v1654 = vld [vmem:[%s12 + $0x18] sm:$0xff]
        %v1656 = vsel %vm517, %v1651, 0
        %v1659 = vsel %vm517, %v1652, 0
        %v1662 = vsel %vm517, %v1653, 0
        %v1665 = vsel %vm517, %v1654, 0
        %1667 = vmatprep.subr.mxu0 0.0
        %1668 = vmatpush1.msra.mxu0 0.0
        %1669 = vmatprep.subr.mxu0 0.0
        %1670 = vmatpush1.msra.mxu0 0.0
        %1671 = vmatprep.subr.mxu0 0.0
        %1672 = vmatpush1.msra.mxu0 0.0
        %1673 = vmatprep.subr.mxu0 0.0
        %1674 = vmatpush1.msra.mxu0 0.0
        %1675 = vmatprep.subr.mxu0 0.0
        %1676 = vmatpush1.msra.mxu0 0.0
        %1677 = vmatprep.subr.mxu0 0.0
        %1678 = vmatpush1.msra.mxu0 0.0
        %1679 = vmatprep.subr.mxu0 0.0
        %1680 = vmatpush1.msra.mxu0 0.0
        %1681 = vmatprep.subr.mxu0 0.0
        %1682 = vmatpush1.msra.mxu0 0.0
        %1683 = vmatprep.subr.mxu0 0.0
        %1684 = vmatpush1.msra.mxu0 0.0
        %1685 = vmatprep.subr.mxu0 0.0
        %1686 = vmatpush1.msra.mxu0 0.0
        %1687 = vmatprep.subr.mxu0 0.0
        %1688 = vmatpush1.msra.mxu0 0.0
        %1689 = vmatprep.subr.mxu0 0.0
        %1690 = vmatpush1.msra.mxu0 0.0
        %1691 = vmatprep.subr.mxu0 0.0
        %1692 = vmatpush1.msra.mxu0 0.0
        %1693 = vmatprep.subr.mxu0 0.0
        %1694 = vmatpush1.msra.mxu0 0.0
        %1695 = vmatprep.subr.mxu0 %v1646
        %1696 = vmatpush1.msra.mxu0 %v1645
        %1697 = vmatprep.subr.mxu0 %v1644
        %1698 = vmatpush1.msra.mxu0 %v1643
        %1699 = vmatprep.subr.mxu0 0.0
        %1700 = vmatpush2.msra.mxu0 0.0
        %1701 = vmatprep.subr.mxu0 0.0
        %1702 = vmatpush2.msra.mxu0 0.0
        %1703 = vmatprep.subr.mxu0 0.0
        %1704 = vmatpush2.msra.mxu0 0.0
        %1705 = vmatprep.subr.mxu0 0.0
        %1706 = vmatpush2.msra.mxu0 0.0
        %1707 = vmatprep.subr.mxu0 0.0
        %1708 = vmatpush2.msra.mxu0 0.0
        %1709 = vmatprep.subr.mxu0 0.0
        %1710 = vmatpush2.msra.mxu0 0.0
        %1711 = vmatprep.subr.mxu0 0.0
        %1712 = vmatpush2.msra.mxu0 0.0
        %1713 = vmatprep.subr.mxu0 0.0
        %1714 = vmatpush2.msra.mxu0 0.0
        %1715 = vmatprep.subr.mxu0 0.0
        %1716 = vmatpush2.msra.mxu0 0.0
        %1717 = vmatprep.subr.mxu0 0.0
        %1718 = vmatpush2.msra.mxu0 0.0
        %1719 = vmatprep.subr.mxu0 0.0
        %1720 = vmatpush2.msra.mxu0 0.0
        %1721 = vmatprep.subr.mxu0 0.0
        %1722 = vmatpush2.msra.mxu0 0.0
        %1723 = vmatprep.subr.mxu0 0.0
        %1724 = vmatpush2.msra.mxu0 0.0
        %1725 = vmatprep.subr.mxu0 0.0
        %1726 = vmatpush2.msra.mxu0 0.0
        %1727 = vmatprep.subr.mxu0 0.0
        %1728 = vmatpush2.msra.mxu0 0.0
        %1729 = vmatprep.subr.mxu0 0.0
        %1730 = vmatpush2.msra.mxu0 0.0
        %1731 = vmatprep.mubr.f32.mxu0 0.0
        %1732 = vmatmul.mubr.f32.gmra.mxu0 %v1656
        %v1733 = vpop.f32.mrf.mxu0
        %v1734 = vadd.f32 0.0, %v1733
        %v1735 = vpop.f32.mrf.mxu0
        %v1736 = vadd.f32 0.0, %v1735
        %1737 = vmatprep.mubr.f32.mxu0 0.0
        %1738 = vmatmul.mubr.f32.gmra.mxu0 %v1659
        %v1739 = vpop.f32.mrf.mxu0
        %v1740 = vadd.f32 0.0, %v1739
        %v1741 = vpop.f32.mrf.mxu0
        %v1742 = vadd.f32 0.0, %v1741
        %1743 = vmatprep.mubr.f32.mxu0 0.0
        %1744 = vmatmul.mubr.f32.gmra.mxu0 %v1662
        %v1745 = vpop.f32.mrf.mxu0
        %v1746 = vadd.f32 0.0, %v1745
        %v1747 = vpop.f32.mrf.mxu0
        %v1748 = vadd.f32 0.0, %v1747
        %1749 = vmatprep.mubr.f32.mxu0 0.0
        %1750 = vmatmul.mubr.f32.gmra.mxu0 %v1665
        %v1751 = vpop.f32.mrf.mxu0
        %v1752 = vadd.f32 0.0, %v1751
        %v1753 = vpop.f32.mrf.mxu0
        %v1754 = vadd.f32 0.0, %v1753
        %1755 = vdwg.mxu0
        %v1757 = vsel %vm517, %v1647, 0
        %v1760 = vsel %vm517, %v1648, 0
        %v1763 = vsel %vm517, %v1649, 0
        %v1766 = vsel %vm517, %v1650, 0
        %1768 = vmatprep.subr.mxu0 0.0
        %1769 = vmatpush1.msra.mxu0 0.0
        %1770 = vmatprep.subr.mxu0 0.0
        %1771 = vmatpush1.msra.mxu0 0.0
        %1772 = vmatprep.subr.mxu0 0.0
        %1773 = vmatpush1.msra.mxu0 0.0
        %1774 = vmatprep.subr.mxu0 0.0
        %1775 = vmatpush1.msra.mxu0 0.0
        %1776 = vmatprep.subr.mxu0 0.0
        %1777 = vmatpush1.msra.mxu0 0.0
        %1778 = vmatprep.subr.mxu0 0.0
        %1779 = vmatpush1.msra.mxu0 0.0
        %1780 = vmatprep.subr.mxu0 0.0
        %1781 = vmatpush1.msra.mxu0 0.0
        %1782 = vmatprep.subr.mxu0 0.0
        %1783 = vmatpush1.msra.mxu0 0.0
        %1784 = vmatprep.subr.mxu0 0.0
        %1785 = vmatpush1.msra.mxu0 0.0
        %1786 = vmatprep.subr.mxu0 0.0
        %1787 = vmatpush1.msra.mxu0 0.0
        %1788 = vmatprep.subr.mxu0 0.0
        %1789 = vmatpush1.msra.mxu0 0.0
        %1790 = vmatprep.subr.mxu0 0.0
        %1791 = vmatpush1.msra.mxu0 0.0
        %1792 = vmatprep.subr.mxu0 0.0
        %1793 = vmatpush1.msra.mxu0 0.0
        %1794 = vmatprep.subr.mxu0 0.0
        %1795 = vmatpush1.msra.mxu0 0.0
        %1796 = vmatprep.subr.mxu0 %v1201
        %1797 = vmatpush1.msra.mxu0 %v1200
        %1798 = vmatprep.subr.mxu0 %v1199
        %1799 = vmatpush1.msra.mxu0 %v1198
        %1800 = vmatprep.subr.mxu0 0.0
        %1801 = vmatpush2.msra.mxu0 0.0
        %1802 = vmatprep.subr.mxu0 0.0
        %1803 = vmatpush2.msra.mxu0 0.0
        %1804 = vmatprep.subr.mxu0 0.0
        %1805 = vmatpush2.msra.mxu0 0.0
        %1806 = vmatprep.subr.mxu0 0.0
        %1807 = vmatpush2.msra.mxu0 0.0
        %1808 = vmatprep.subr.mxu0 0.0
        %1809 = vmatpush2.msra.mxu0 0.0
        %1810 = vmatprep.subr.mxu0 0.0
        %1811 = vmatpush2.msra.mxu0 0.0
        %1812 = vmatprep.subr.mxu0 0.0
        %1813 = vmatpush2.msra.mxu0 0.0
        %1814 = vmatprep.subr.mxu0 0.0
        %1815 = vmatpush2.msra.mxu0 0.0
        %1816 = vmatprep.subr.mxu0 0.0
        %1817 = vmatpush2.msra.mxu0 0.0
        %1818 = vmatprep.subr.mxu0 0.0
        %1819 = vmatpush2.msra.mxu0 0.0
        %1820 = vmatprep.subr.mxu0 0.0
        %1821 = vmatpush2.msra.mxu0 0.0
        %1822 = vmatprep.subr.mxu0 0.0
        %1823 = vmatpush2.msra.mxu0 0.0
        %1824 = vmatprep.subr.mxu0 0.0
        %1825 = vmatpush2.msra.mxu0 0.0
        %1826 = vmatprep.subr.mxu0 0.0
        %1827 = vmatpush2.msra.mxu0 0.0
        %1828 = vmatprep.subr.mxu0 0.0
        %1829 = vmatpush2.msra.mxu0 0.0
        %1830 = vmatprep.subr.mxu0 0.0
        %1831 = vmatpush2.msra.mxu0 0.0
        %1832 = vmatprep.mubr.f32.mxu0 0.0
        %1833 = vmatmul.mubr.f32.gmra.mxu0 %v1757
        %v1834 = vpop.f32.mrf.mxu0
        %v1835 = vadd.f32 %v1734, %v1834
        %v1836 = vpop.f32.mrf.mxu0
        %v1837 = vadd.f32 %v1736, %v1836
        %1838 = vmatprep.mubr.f32.mxu0 0.0
        %1839 = vmatmul.mubr.f32.gmra.mxu0 %v1760
        %v1840 = vpop.f32.mrf.mxu0
        %v1841 = vadd.f32 %v1740, %v1840
        %v1842 = vpop.f32.mrf.mxu0
        %v1843 = vadd.f32 %v1742, %v1842
        %1844 = vmatprep.mubr.f32.mxu0 0.0
        %1845 = vmatmul.mubr.f32.gmra.mxu0 %v1763
        %v1846 = vpop.f32.mrf.mxu0
        %v1847 = vadd.f32 %v1746, %v1846
        %v1848 = vpop.f32.mrf.mxu0
        %v1849 = vadd.f32 %v1748, %v1848
        %1850 = vmatprep.mubr.f32.mxu0 0.0
        %1851 = vmatmul.mubr.f32.gmra.mxu0 %v1766
        %v1852 = vpop.f32.mrf.mxu0
        %v1853 = vadd.f32 %v1752, %v1852
        %v1854 = vpop.f32.mrf.mxu0
        %v1855 = vadd.f32 %v1754, %v1854
        %1856 = vdwg.mxu0
        %v1857 = vld [vmem:[%s13] sm:$0xff]
        %v1858 = vld [vmem:[%s13 + $0x8] sm:$0xff]
        %v1859 = vld [vmem:[%s13 + $0x10] sm:$0xff]
        %v1860 = vld [vmem:[%s13 + $0x18] sm:$0xff]
        %1862 = vset.pattern.permute.xlu0 0
        %1863 = vperm.xlu0 %1862, %v1857
        %v1864 = vpop.permute.xlu0 %1863
        %1867 = vset.pattern.permute.xlu0 0
        %1868 = vperm.xlu0 %1867, %v1858
        %v1869 = vpop.permute.xlu0 %1868
        %1872 = vset.pattern.permute.xlu0 0
        %1873 = vperm.xlu0 %1872, %v1859
        %v1874 = vpop.permute.xlu0 %1873
        %1877 = vset.pattern.permute.xlu0 0
        %1878 = vperm.xlu0 %1877, %v1860
        %v1879 = vpop.permute.xlu0 %1878
        %v1881 = vadd.f32 %v1835, %v1864
        %v1882 = vadd.f32 %v1837, %v1864
        %v1883 = vadd.f32 %v1841, %v1869
        %v1884 = vadd.f32 %v1843, %v1869
        %v1885 = vadd.f32 %v1847, %v1874
        %v1886 = vadd.f32 %v1849, %v1874
        %v1887 = vadd.f32 %v1853, %v1879
        %v1888 = vadd.f32 %v1855, %v1879
        %v1889 = vmax.f32 %v1881, 0.0
        %v1890 = vmax.f32 %v1882, 0.0
        %v1891 = vmax.f32 %v1883, 0.0
        %v1892 = vmax.f32 %v1884, 0.0
        %v1893 = vmax.f32 %v1885, 0.0
        %v1894 = vmax.f32 %v1886, 0.0
        %v1895 = vmax.f32 %v1887, 0.0
        %v1896 = vmax.f32 %v1888, 0.0
        %v1897 = vmul.f32 %v752, %v1889
        %v1898 = vmul.f32 %v753, %v1890
        %v1899 = vmul.f32 %v754, %v1891
        %v1900 = vmul.f32 %v755, %v1892
        %v1901 = vmul.f32 %v756, %v1893
        %v1902 = vmul.f32 %v757, %v1894
        %v1903 = vmul.f32 %v758, %v1895
        %v1904 = vmul.f32 %v759, %v1896
        %v1905 = vadd.f32 %v1897, %v752
        %v1906 = vadd.f32 %v1898, %v753
        %v1907 = vadd.f32 %v1899, %v754
        %v1908 = vadd.f32 %v1900, %v755
        %v1909 = vadd.f32 %v1901, %v756
        %v1910 = vadd.f32 %v1902, %v757
        %v1911 = vadd.f32 %v1903, %v758
        %v1912 = vadd.f32 %v1904, %v759
        %v1913 = vmax.f32 %v1905, 0.0
        %v1914 = vmax.f32 %v1906, 0.0
        %v1915 = vmax.f32 %v1907, 0.0
        %v1916 = vmax.f32 %v1908, 0.0
        %v1917 = vmax.f32 %v1909, 0.0
        %v1918 = vmax.f32 %v1910, 0.0
        %v1919 = vmax.f32 %v1911, 0.0
        %v1920 = vmax.f32 %v1912, 0.0
        %1921 = vst [vmem:[%s490] sm:$0xff] %v1913
        %1922 = vst [vmem:[%s490 + $0x8] sm:$0xff] %v1914
        %1923 = vst [vmem:[%s490 + $0x10] sm:$0xff] %v1915
        %1924 = vst [vmem:[%s490 + $0x18] sm:$0xff] %v1916
        %1925 = vst [vmem:[%s490 + $0x20] sm:$0xff] %v1917
        %1926 = vst [vmem:[%s490 + $0x28] sm:$0xff] %v1918
        %1927 = vst [vmem:[%s490 + $0x30] sm:$0xff] %v1919
        %1928 = vst [vmem:[%s490 + $0x38] sm:$0xff] %v1920
        %s1929 = sand.u32 %s341, 1
        %s1930 = scalar_lea.sflag [#allocation4], %s1929
        %s1931 = sand.u32 %s341, 1
        %s1932 = smul.addr %s1931, 64
        %s1933 = scalar_lea.vmem [#allocation5], %s1932
        // Predicated region
        $region81: #{tpu_custom_call.1} parent=75 // pred_check
          %p1934 = pneg %p351
        $region82: #{tpu_custom_call.1} parent=75 // pred_check_branch
          %1936 = sbr.rel (%p1934) target = $region84
        $region83: #{tpu_custom_call.1} parent=75 // pred_region
          %s1938 = ssub.s32 1024, 1024
          %1939 = vsyncadd %s1930, %s1938
          %s1940 = smul.addr %s29, 8
          %s1941 = smul.addr %s1940, 128
          %s1942 = scalar_lea.hbm %s14, %s1941
          %s1943 = sshll.u32 %s1933, 4
          %s1944 = int_to_ptr.vmem [resolvable:$true] %s1943
          %1949 = dma.vmem_to_hbm [thread:$0]  %s1944, 1024, %s1942, %s1930, 256, 256, 16
        $region84: #{tpu_custom_call.1} parent=75 // pred_fallthru
          _
      $region76: #{tpu_custom_call.1} parent=5 // pred_fallthru
        _
      %p1950 = scmp.le.s32.totalorder 2, %s24
      // Predicated region
      $region85: #{tpu_custom_call.1} parent=5 // pred_check
        %p1951 = pneg %p1950
      $region86: #{tpu_custom_call.1} parent=5 // pred_check_branch
        %1953 = sbr.rel (%p1951) target = $region88
      $region87: #{tpu_custom_call.1} parent=5 // pred_region
        %s1954 = ssub.s32 %s24, 2
        // Predicated region
        $region89: #{tpu_custom_call.1} parent=87 // pred_check
          %p1955 = pneg %p357
        $region90: #{tpu_custom_call.1} parent=87 // pred_check_branch
          %1957 = sbr.rel (%p1955) target = $region92
        $region91: #{tpu_custom_call.1} parent=87 // pred_region
          %s1958 = sand.u32 %s342, 1
          %s1959 = scalar_lea.sflag [#allocation4], %s1958
          %s1960 = sand.u32 %s342, 1
          %s1961 = smul.addr %s1960, 64
          %s1962 = scalar_lea.vmem [#allocation5], %s1961
          %1963 = dma.done %s1959, 1024
        $region92: #{tpu_custom_call.1} parent=87 // pred_fallthru
          _
      $region88: #{tpu_custom_call.1} parent=5 // pred_fallthru
        _
    $region6: #{tpu_custom_call.1} parent=1 // loop_footer
      %s28 = sadd.s32 1, %s24
    $region7: #{tpu_custom_call.1} parent=1 // loop_footer_branch
      %23 = sbr.rel target = $region3
    $region8: #{tpu_custom_call.1} parent=1 // loop_exit
      _
    %1964 = vsyncpa [#allocation3], 1
    %s1965 = scalar_lea.sflag [#allocation3], 1
    %1966 = vsyncpa %s1965, 1
    %1967 = vsyncpa [#allocation4], 1
    %s1968 = scalar_lea.sflag [#allocation4], 1
    %1969 = vsyncpa %s1968, 1

</llo_original>
